<compile_context>
chip_gen: v7x
topology: tpu7x:2x2x1
jax: 0.10.0
libtpu: 0.0.40
codegen_flags: <defaults>
</compile_context>

<pallas_src>
import functools

import numpy as np

import jax
import jax.numpy as jnp
from jax.experimental import pallas as pl
from jax.experimental.pallas import tpu as pltpu

EPS = 1e-5


# --------------------------------------------------------------------------
# In-kernel helpers
# --------------------------------------------------------------------------
def _group_norm_silu(v, gamma, beta, cpg, eps):
    """GroupNorm + SiLU on a (C, HW) f32 value.  gamma/beta: (C, 1)."""
    C, HW = v.shape
    inv = 1.0 / float(cpg * HW)

    def pool(per_channel):                     # (C, 1) channel sums -> group sums
        if cpg == 1:                           # groups == channels (test config)
            return per_channel
        g = jnp.sum(per_channel.reshape(C // cpg, cpg), axis=-1, keepdims=True)
        return jnp.repeat(g, cpg, axis=0)

    mean = pool(jnp.sum(v, axis=-1, keepdims=True)) * inv
    d = v - mean
    var = pool(jnp.sum(d * d, axis=-1, keepdims=True)) * inv
    y = d * jax.lax.rsqrt(var + eps) * gamma + beta
    return y * (1.0 / (1.0 + jnp.exp(-y)))     # SiLU


def _conv3x3(v, w_ref, masks, width):
    """3x3 'same' conv of v (Ci, HW) with w_ref (Co, 9*Ci) -> (Co, HW) f32.

    Shifted taps are built with lane rotations (XLU) + boundary masks; the
    nine taps are concatenated into an im2col matrix so the conv is a single
    MXU matmul with contraction K = 9*Ci.
    """
    Ci, HW = v.shape
    wf = w_ref[...].astype(jnp.float32)

    taps = []
    k = 0
    for oy in (-1, 0, 1):
        for ox in (-1, 0, 1):
            if oy == 0 and ox == 0:
                taps.append(v)                 # center tap: no shift, mask == 1
            else:
                shift = (-(oy * width + ox)) % HW
                taps.append(pltpu.roll(v, shift=shift, axis=1) * masks[k])
            k += 1

    if Ci % 8 == 0:                            # sublane-aligned im2col concat
        patches = jnp.concatenate(taps, axis=0)             # (9*Ci, HW)
        return jnp.dot(wf, patches, preferred_element_type=jnp.float32)

    # Fallback for sublane-unaligned channel counts: per-tap accumulation.
    acc = jnp.dot(wf[:, 4 * Ci:5 * Ci], taps[4], preferred_element_type=jnp.float32)
    for k in range(9):
        if k != 4:
            acc = acc + jnp.dot(wf[:, k * Ci:(k + 1) * Ci], taps[k],
                                preferred_element_type=jnp.float32)
    return acc


# --------------------------------------------------------------------------
# Fused kernel: one batch sample per grid step.
# --------------------------------------------------------------------------
def _residual_block_kernel(x_ref, g1_ref, b1_ref, g2_ref, b2_ref,
                           w1_ref, w2_ref, *rest,
                           width, eps, cpg1, cpg2, has_up):
    if has_up:
        wup_ref, masks_ref, o_ref = rest
    else:
        masks_ref, o_ref = rest

    masks = masks_ref[...]                         # (9, 1, HW)
    xv = x_ref[...].astype(jnp.float32)            # (Cin, HW)

    # norm1 + SiLU + conv1
    y1 = _group_norm_silu(xv, g1_ref[...], b1_ref[...], cpg1, eps)
    h = _conv3x3(y1, w1_ref, masks, width)         # (hidden_padded, HW)

    # norm2 + SiLU + conv2
    y2 = _group_norm_silu(h, g2_ref[...], b2_ref[...], cpg2, eps)
    out = _conv3x3(y2, w2_ref, masks, width)       # (Cout, HW)

    # residual: concat([x, up_conv(x)]) added directly (VPU add, no identity-tap conv)
    if has_up:
        up = _conv3x3(xv, wup_ref, masks, width)   # (Cout - Cin, HW)
        res = jnp.concatenate([xv, up], axis=0)    # (Cout, HW)
    else:
        res = xv
    o_ref[...] = (out + res).astype(o_ref.dtype)   # lane-dense full-width store


# --------------------------------------------------------------------------
# Host-side helpers
# --------------------------------------------------------------------------
def _oihw_to_flat(w):
    """(O, I, 3, 3) torch conv weight -> (O, 9*I); column = (dy*3+dx)*I + i."""
    o, i = w.shape[0], w.shape[1]
    return jnp.transpose(w, (0, 2, 3, 1)).reshape(o, 9 * i)


def _tap_masks(H, W):
    """(9, 1, H*W) f32 validity masks for the 3x3 taps (trace-time constants)."""
    hh = np.arange(H * W) // W
    ww = np.arange(H * W) % W
    m = []
    for oy in (-1, 0, 1):
        for ox in (-1, 0, 1):
            valid = ((hh + oy >= 0) & (hh + oy < H) &
                     (ww + ox >= 0) & (ww + ox < W))
            m.append(valid.astype(np.float32))
    return jnp.asarray(np.stack(m)[:, None, :])


def residual_block_forward(params, x_nchw, num_groups=32, eps=EPS):
    """Forward pass of ResidualBlock (group norm, SiLU, dropout p=0)."""
    # TODO(synk): training-mode dropout (p > 0) and the BatchNorm variant
    # (normalization="batch" with running stats) are not implemented.
    N, Cin, H, W = x_nchw.shape
    HW = H * W
    hidden = params["w1"].shape[0]
    Cout = params["w2"].shape[0]
    has_up = "wup" in params

    G1 = num_groups if num_groups < Cin else Cin
    G2 = num_groups if num_groups < hidden else hidden
    cpg1, cpg2 = Cin // G1, hidden // G2

    # Zero-pad the hidden channel dim up to a sublane multiple so conv2's
    # im2col concat is (8,128)-aligned; valid because norm2 is per-channel.
    hp = ((hidden + 7) // 8) * 8 if cpg2 == 1 else hidden
    w1, w2 = params["w1"], params["w2"]
    g2, b2 = params["gamma2"], params["beta2"]
    if hp != hidden:
        w1 = jnp.pad(w1, ((0, hp - hidden), (0, 0), (0, 0), (0, 0)))
        w2 = jnp.pad(w2, ((0, 0), (0, hp - hidden), (0, 0), (0, 0)))
        g2 = jnp.pad(g2, (0, hp - hidden), constant_values=1.0)
        b2 = jnp.pad(b2, (0, hp - hidden))

    x = x_nchw.reshape(N, Cin, HW)                 # NCHW is already spatial-minor

    args = [
        x,
        params["gamma1"].reshape(Cin, 1), params["beta1"].reshape(Cin, 1),
        g2.reshape(hp, 1), b2.reshape(hp, 1),
        _oihw_to_flat(w1),                         # (hp, 9*Cin)
        _oihw_to_flat(w2),                         # (Cout, 9*hp)
    ]
    in_specs = [
        pl.BlockSpec((None, Cin, HW), lambda n: (n, 0, 0)),
        pl.BlockSpec((Cin, 1), lambda n: (0, 0)),
        pl.BlockSpec((Cin, 1), lambda n: (0, 0)),
        pl.BlockSpec((hp, 1), lambda n: (0, 0)),
        pl.BlockSpec((hp, 1), lambda n: (0, 0)),
        pl.BlockSpec((hp, 9 * Cin), lambda n: (0, 0)),
        pl.BlockSpec((Cout, 9 * hp), lambda n: (0, 0)),
    ]
    if has_up:
        args.append(_oihw_to_flat(params["wup"]))              # (Cout-Cin, 9*Cin)
        in_specs.append(pl.BlockSpec((Cout - Cin, 9 * Cin), lambda n: (0, 0)))
    args.append(_tap_masks(H, W))                              # (9, 1, HW)
    in_specs.append(pl.BlockSpec((9, 1, HW), lambda n: (0, 0, 0)))

    kern = functools.partial(_residual_block_kernel, width=W, eps=eps,
                             cpg1=cpg1, cpg2=cpg2, has_up=has_up)
    out = pl.pallas_call(
        kern,
        grid=(N,),
        out_shape=jax.ShapeDtypeStruct((N, Cout, HW), x_nchw.dtype),
        in_specs=in_specs,
        out_specs=pl.BlockSpec((None, Cout, HW), lambda n: (n, 0, 0)),
        compiler_params=pltpu.CompilerParams(
            dimension_semantics=("parallel",)),    # samples shard across v7x TCs
    )(*args)
    return out.reshape(N, Cout, H, W)


# --------------------------------------------------------------------------
# Parameter setup (deterministic; mirrors ResidualBlock.__init__)
# --------------------------------------------------------------------------
def init_residual_block(key, in_channels, out_channels, scale_factor=4):
    hidden = in_channels // scale_factor
    k1, k2, k3 = jax.random.split(key, 3)
    params = dict(
        gamma1=jnp.ones((in_channels,), jnp.float32),
        beta1=jnp.zeros((in_channels,), jnp.float32),
        gamma2=jnp.ones((hidden,), jnp.float32),
        beta2=jnp.zeros((hidden,), jnp.float32),
        w1=0.02 * jax.random.normal(k1, (hidden, in_channels, 3, 3), jnp.float32),   # OIHW
        w2=0.02 * jax.random.normal(k2, (out_channels, hidden, 3, 3), jnp.float32),  # OIHW
    )
    if out_channels > in_channels:
        params["wup"] = 0.02 * jax.random.normal(
            k3, (out_channels - in_channels, in_channels, 3, 3), jnp.float32)
    return params


# --------------------------------------------------------------------------
# Pure-JAX reference (for numerical validation)
# --------------------------------------------------------------------------
def reference_forward(params, x_nchw, num_groups=32, eps=EPS):
    def gn(v, gamma, beta):
        N, C, H, W = v.shape
        G = num_groups if num_groups < C else C
        vg = v.reshape(N, G, (C // G) * H * W)
        mu = vg.mean(axis=2, keepdims=True)
        var = vg.var(axis=2, keepdims=True)
        vn = ((vg - mu) / jnp.sqrt(var + eps)).reshape(N, C, H, W)
        return vn * gamma.reshape(1, C, 1, 1) + beta.reshape(1, C, 1, 1)

    def silu(v):
        return v * jax.nn.sigmoid(v)

    def conv(v, w):
        return jax.lax.conv_general_dilated(
            v, w, (1, 1), ((1, 1), (1, 1)),
            dimension_numbers=("NCHW", "OIHW", "NCHW"),
            precision=jax.lax.Precision.HIGHEST)

    h = conv(silu(gn(x_nchw, params["gamma1"], params["beta1"])), params["w1"])
    h = conv(silu(gn(h, params["gamma2"], params["beta2"])), params["w2"])
    r = x_nchw
    if "wup" in params:
        r = jnp.concatenate([r, conv(x_nchw, params["wup"])], axis=1)
    return h + r


if __name__ == "__main__":
    key = jax.random.PRNGKey(0)
    kx, kp = jax.random.split(key)

    in_channels, out_channels = 16, 32        # scale_factor=4 -> hidden=4
    N, H, W = 2, 16, 16
    x = jax.random.normal(kx, (N, in_channels, H, W), jnp.float32)  # NCHW, like torch
    params = init_residual_block(kp, in_channels, out_channels)

    fwd = jax.jit(residual_block_forward)
    out = jax.block_until_ready(fwd(params, x))
    assert out.shape == (N, out_channels, H, W), out.shape

    ref = reference_forward(params, x)
    if not jnp.allclose(out, ref, atol=5e-3, rtol=5e-3):
        max_err = float(jnp.max(jnp.abs(out - ref)))
        raise AssertionError(f"Pallas output mismatch vs reference, max abs err={max_err}")

    print("KERNEL_OK")
</pallas_src>

<mosaic_0001>
module attributes {stable_mosaic.version = 11 : i64} {
  func.func @_residual_block_kernel(%arg0: i32, %arg1: memref<1x16x256xf32, #tpu.memory_space<vmem>>, %arg2: memref<16x1xf32, #tpu.memory_space<vmem>>, %arg3: memref<16x1xf32, #tpu.memory_space<vmem>>, %arg4: memref<8x1xf32, #tpu.memory_space<vmem>>, %arg5: memref<8x1xf32, #tpu.memory_space<vmem>>, %arg6: memref<8x144xf32, #tpu.memory_space<vmem>>, %arg7: memref<32x72xf32, #tpu.memory_space<vmem>>, %arg8: memref<16x144xf32, #tpu.memory_space<vmem>>, %arg9: memref<9x1x256xf32, #tpu.memory_space<vmem>>, %arg10: memref<1x32x256xf32, #tpu.memory_space<vmem>>) attributes {dimension_semantics = [#tpu.dimension_semantics<parallel>], iteration_bounds = array<i64: 2>, scalar_prefetch = 0 : i64, scratch_operands = 0 : i64, tpu.core_type = #tpu.core_type<tc>, window_params = [{transform_indices = @transform_0, window_bounds = array<i64: 1, 16, 256>}, {pipeline_mode = #tpu.pipeline_mode<synchronous>, transform_indices = @transform_1, window_bounds = array<i64: 16, 1>}, {pipeline_mode = #tpu.pipeline_mode<synchronous>, transform_indices = @transform_2, window_bounds = array<i64: 16, 1>}, {pipeline_mode = #tpu.pipeline_mode<synchronous>, transform_indices = @transform_3, window_bounds = array<i64: 8, 1>}, {pipeline_mode = #tpu.pipeline_mode<synchronous>, transform_indices = @transform_4, window_bounds = array<i64: 8, 1>}, {pipeline_mode = #tpu.pipeline_mode<synchronous>, transform_indices = @transform_5, window_bounds = array<i64: 8, 144>}, {pipeline_mode = #tpu.pipeline_mode<synchronous>, transform_indices = @transform_6, window_bounds = array<i64: 32, 72>}, {pipeline_mode = #tpu.pipeline_mode<synchronous>, transform_indices = @transform_7, window_bounds = array<i64: 16, 144>}, {pipeline_mode = #tpu.pipeline_mode<synchronous>, transform_indices = @transform_8, window_bounds = array<i64: 9, 1, 256>}, {transform_indices = @transform_9, window_bounds = array<i64: 1, 32, 256>}]} {
    %c0 = arith.constant 0 : index
    %c0_0 = arith.constant 0 : index
    %c0_1 = arith.constant 0 : index
    %0 = vector.load %arg9[%c0, %c0_0, %c0_1] : memref<9x1x256xf32, #tpu.memory_space<vmem>>, vector<9x1x256xf32>
    %c0_2 = arith.constant 0 : index
    %c0_3 = arith.constant 0 : index
    %c0_4 = arith.constant 0 : index
    %1 = vector.load %arg1[%c0_2, %c0_3, %c0_4] : memref<1x16x256xf32, #tpu.memory_space<vmem>>, vector<1x16x256xf32>
    %2 = vector.shape_cast %1 : vector<1x16x256xf32> to vector<16x256xf32>
    %c0_5 = arith.constant 0 : index
    %c0_6 = arith.constant 0 : index
    %3 = vector.load %arg2[%c0_5, %c0_6] : memref<16x1xf32, #tpu.memory_space<vmem>>, vector<16x1xf32>
    %c0_7 = arith.constant 0 : index
    %c0_8 = arith.constant 0 : index
    %4 = vector.load %arg3[%c0_7, %c0_8] : memref<16x1xf32, #tpu.memory_space<vmem>>, vector<16x1xf32>
    %cst = arith.constant dense<0.000000e+00> : vector<16xf32>
    %5 = vector.multi_reduction <add>, %2, %cst [1] : vector<16x256xf32> to vector<16xf32>
    %6 = vector.shape_cast %5 : vector<16xf32> to vector<16x1xf32>
    %cst_9 = arith.constant 3.906250e-03 : f32
    %7 = vector.broadcast %cst_9 : f32 to vector<16x1xf32>
    %8 = arith.mulf %6, %7 : vector<16x1xf32>
    %9 = vector.broadcast %8 : vector<16x1xf32> to vector<16x256xf32>
    %10 = arith.subf %2, %9 : vector<16x256xf32>
    %11 = arith.mulf %10, %10 : vector<16x256xf32>
    %cst_10 = arith.constant dense<0.000000e+00> : vector<16xf32>
    %12 = vector.multi_reduction <add>, %11, %cst_10 [1] : vector<16x256xf32> to vector<16xf32>
    %13 = vector.shape_cast %12 : vector<16xf32> to vector<16x1xf32>
    %cst_11 = arith.constant 3.906250e-03 : f32
    %14 = vector.broadcast %cst_11 : f32 to vector<16x1xf32>
    %15 = arith.mulf %13, %14 : vector<16x1xf32>
    %cst_12 = arith.constant 9.99999974E-6 : f32
    %16 = vector.broadcast %cst_12 : f32 to vector<16x1xf32>
    %17 = arith.addf %15, %16 : vector<16x1xf32>
    %18 = math.rsqrt %17 : vector<16x1xf32>
    %19 = vector.broadcast %18 : vector<16x1xf32> to vector<16x256xf32>
    %20 = arith.mulf %10, %19 : vector<16x256xf32>
    %21 = vector.broadcast %3 : vector<16x1xf32> to vector<16x256xf32>
    %22 = arith.mulf %20, %21 : vector<16x256xf32>
    %23 = vector.broadcast %4 : vector<16x1xf32> to vector<16x256xf32>
    %24 = arith.addf %22, %23 : vector<16x256xf32>
    %cst_13 = arith.constant 0.000000e+00 : f32
    %25 = vector.broadcast %cst_13 : f32 to vector<16x256xf32>
    %26 = arith.subf %25, %24 : vector<16x256xf32>
    %27 = math.exp %26 : vector<16x256xf32>
    %cst_14 = arith.constant 1.000000e+00 : f32
    %28 = vector.broadcast %cst_14 : f32 to vector<16x256xf32>
    %29 = arith.addf %28, %27 : vector<16x256xf32>
    %cst_15 = arith.constant 1.000000e+00 : f32
    %30 = vector.broadcast %cst_15 : f32 to vector<16x256xf32>
    %31 = arith.divf %30, %29 : vector<16x256xf32>
    %32 = arith.mulf %24, %31 : vector<16x256xf32>
    %c0_16 = arith.constant 0 : index
    %c0_17 = arith.constant 0 : index
    %33 = vector.load %arg6[%c0_16, %c0_17] : memref<8x144xf32, #tpu.memory_space<vmem>>, vector<8x144xf32>
    %c17_i32 = arith.constant 17 : i32
    %34 = tpu.dynamic_rotate %32 by %c17_i32 dim 1 : vector<16x256xf32>, i32 -> vector<16x256xf32>
    %35 = vector.extract_strided_slice %0 {offsets = [0, 0, 0], sizes = [1, 1, 256], strides = [1, 1, 1]} : vector<9x1x256xf32> to vector<1x1x256xf32>
    %36 = vector.shape_cast %35 : vector<1x1x256xf32> to vector<1x256xf32>
    %37 = vector.broadcast %36 : vector<1x256xf32> to vector<16x256xf32>
    %38 = arith.mulf %34, %37 : vector<16x256xf32>
    %c16_i32 = arith.constant 16 : i32
    %39 = tpu.dynamic_rotate %32 by %c16_i32 dim 1 : vector<16x256xf32>, i32 -> vector<16x256xf32>
    %40 = vector.extract_strided_slice %0 {offsets = [1, 0, 0], sizes = [1, 1, 256], strides = [1, 1, 1]} : vector<9x1x256xf32> to vector<1x1x256xf32>
    %41 = vector.shape_cast %40 : vector<1x1x256xf32> to vector<1x256xf32>
    %42 = vector.broadcast %41 : vector<1x256xf32> to vector<16x256xf32>
    %43 = arith.mulf %39, %42 : vector<16x256xf32>
    %c15_i32 = arith.constant 15 : i32
    %44 = tpu.dynamic_rotate %32 by %c15_i32 dim 1 : vector<16x256xf32>, i32 -> vector<16x256xf32>
    %45 = vector.extract_strided_slice %0 {offsets = [2, 0, 0], sizes = [1, 1, 256], strides = [1, 1, 1]} : vector<9x1x256xf32> to vector<1x1x256xf32>
    %46 = vector.shape_cast %45 : vector<1x1x256xf32> to vector<1x256xf32>
    %47 = vector.broadcast %46 : vector<1x256xf32> to vector<16x256xf32>
    %48 = arith.mulf %44, %47 : vector<16x256xf32>
    %c1_i32 = arith.constant 1 : i32
    %49 = tpu.dynamic_rotate %32 by %c1_i32 dim 1 : vector<16x256xf32>, i32 -> vector<16x256xf32>
    %50 = vector.extract_strided_slice %0 {offsets = [3, 0, 0], sizes = [1, 1, 256], strides = [1, 1, 1]} : vector<9x1x256xf32> to vector<1x1x256xf32>
    %51 = vector.shape_cast %50 : vector<1x1x256xf32> to vector<1x256xf32>
    %52 = vector.broadcast %51 : vector<1x256xf32> to vector<16x256xf32>
    %53 = arith.mulf %49, %52 : vector<16x256xf32>
    %c255_i32 = arith.constant 255 : i32
    %54 = tpu.dynamic_rotate %32 by %c255_i32 dim 1 : vector<16x256xf32>, i32 -> vector<16x256xf32>
    %55 = vector.extract_strided_slice %0 {offsets = [5, 0, 0], sizes = [1, 1, 256], strides = [1, 1, 1]} : vector<9x1x256xf32> to vector<1x1x256xf32>
    %56 = vector.shape_cast %55 : vector<1x1x256xf32> to vector<1x256xf32>
    %57 = vector.broadcast %56 : vector<1x256xf32> to vector<16x256xf32>
    %58 = arith.mulf %54, %57 : vector<16x256xf32>
    %c241_i32 = arith.constant 241 : i32
    %59 = tpu.dynamic_rotate %32 by %c241_i32 dim 1 : vector<16x256xf32>, i32 -> vector<16x256xf32>
    %60 = vector.extract_strided_slice %0 {offsets = [6, 0, 0], sizes = [1, 1, 256], strides = [1, 1, 1]} : vector<9x1x256xf32> to vector<1x1x256xf32>
    %61 = vector.shape_cast %60 : vector<1x1x256xf32> to vector<1x256xf32>
    %62 = vector.broadcast %61 : vector<1x256xf32> to vector<16x256xf32>
    %63 = arith.mulf %59, %62 : vector<16x256xf32>
    %c240_i32 = arith.constant 240 : i32
    %64 = tpu.dynamic_rotate %32 by %c240_i32 dim 1 : vector<16x256xf32>, i32 -> vector<16x256xf32>
    %65 = vector.extract_strided_slice %0 {offsets = [7, 0, 0], sizes = [1, 1, 256], strides = [1, 1, 1]} : vector<9x1x256xf32> to vector<1x1x256xf32>
    %66 = vector.shape_cast %65 : vector<1x1x256xf32> to vector<1x256xf32>
    %67 = vector.broadcast %66 : vector<1x256xf32> to vector<16x256xf32>
    %68 = arith.mulf %64, %67 : vector<16x256xf32>
    %c239_i32 = arith.constant 239 : i32
    %69 = tpu.dynamic_rotate %32 by %c239_i32 dim 1 : vector<16x256xf32>, i32 -> vector<16x256xf32>
    %70 = vector.extract_strided_slice %0 {offsets = [8, 0, 0], sizes = [1, 1, 256], strides = [1, 1, 1]} : vector<9x1x256xf32> to vector<1x1x256xf32>
    %71 = vector.shape_cast %70 : vector<1x1x256xf32> to vector<1x256xf32>
    %72 = vector.broadcast %71 : vector<1x256xf32> to vector<16x256xf32>
    %73 = arith.mulf %69, %72 : vector<16x256xf32>
    %74 = tpu.concatenate %38, %43, %48, %53, %32, %58, %63, %68, %73 in 0 : vector<16x256xf32>, vector<16x256xf32>, vector<16x256xf32>, vector<16x256xf32>, vector<16x256xf32>, vector<16x256xf32>, vector<16x256xf32>, vector<16x256xf32>, vector<16x256xf32> -> vector<144x256xf32>
    %cst_18 = arith.constant dense<0.000000e+00> : vector<8x256xf32>
    %75 = tpu.matmul %33, %74, %cst_18 {dimension_numbers = #tpu.dot_dimension_numbers<[1], [0], [0], [1], [0, 0, 1, 1], [], []>} : vector<8x144xf32>, vector<144x256xf32>, vector<8x256xf32> -> vector<8x256xf32>
    %c0_19 = arith.constant 0 : index
    %c0_20 = arith.constant 0 : index
    %76 = vector.load %arg4[%c0_19, %c0_20] : memref<8x1xf32, #tpu.memory_space<vmem>>, vector<8x1xf32>
    %c0_21 = arith.constant 0 : index
    %c0_22 = arith.constant 0 : index
    %77 = vector.load %arg5[%c0_21, %c0_22] : memref<8x1xf32, #tpu.memory_space<vmem>>, vector<8x1xf32>
    %cst_23 = arith.constant dense<0.000000e+00> : vector<8xf32>
    %78 = vector.multi_reduction <add>, %75, %cst_23 [1] : vector<8x256xf32> to vector<8xf32>
    %79 = vector.shape_cast %78 : vector<8xf32> to vector<8x1xf32>
    %cst_24 = arith.constant 3.906250e-03 : f32
    %80 = vector.broadcast %cst_24 : f32 to vector<8x1xf32>
    %81 = arith.mulf %79, %80 : vector<8x1xf32>
    %82 = vector.broadcast %81 : vector<8x1xf32> to vector<8x256xf32>
    %83 = arith.subf %75, %82 : vector<8x256xf32>
    %84 = arith.mulf %83, %83 : vector<8x256xf32>
    %cst_25 = arith.constant dense<0.000000e+00> : vector<8xf32>
    %85 = vector.multi_reduction <add>, %84, %cst_25 [1] : vector<8x256xf32> to vector<8xf32>
    %86 = vector.shape_cast %85 : vector<8xf32> to vector<8x1xf32>
    %cst_26 = arith.constant 3.906250e-03 : f32
    %87 = vector.broadcast %cst_26 : f32 to vector<8x1xf32>
    %88 = arith.mulf %86, %87 : vector<8x1xf32>
    %cst_27 = arith.constant 9.99999974E-6 : f32
    %89 = vector.broadcast %cst_27 : f32 to vector<8x1xf32>
    %90 = arith.addf %88, %89 : vector<8x1xf32>
    %91 = math.rsqrt %90 : vector<8x1xf32>
    %92 = vector.broadcast %91 : vector<8x1xf32> to vector<8x256xf32>
    %93 = arith.mulf %83, %92 : vector<8x256xf32>
    %94 = vector.broadcast %76 : vector<8x1xf32> to vector<8x256xf32>
    %95 = arith.mulf %93, %94 : vector<8x256xf32>
    %96 = vector.broadcast %77 : vector<8x1xf32> to vector<8x256xf32>
    %97 = arith.addf %95, %96 : vector<8x256xf32>
    %cst_28 = arith.constant 0.000000e+00 : f32
    %98 = vector.broadcast %cst_28 : f32 to vector<8x256xf32>
    %99 = arith.subf %98, %97 : vector<8x256xf32>
    %100 = math.exp %99 : vector<8x256xf32>
    %cst_29 = arith.constant 1.000000e+00 : f32
    %101 = vector.broadcast %cst_29 : f32 to vector<8x256xf32>
    %102 = arith.addf %101, %100 : vector<8x256xf32>
    %cst_30 = arith.constant 1.000000e+00 : f32
    %103 = vector.broadcast %cst_30 : f32 to vector<8x256xf32>
    %104 = arith.divf %103, %102 : vector<8x256xf32>
    %105 = arith.mulf %97, %104 : vector<8x256xf32>
    %c0_31 = arith.constant 0 : index
    %c0_32 = arith.constant 0 : index
    %106 = vector.load %arg7[%c0_31, %c0_32] : memref<32x72xf32, #tpu.memory_space<vmem>>, vector<32x72xf32>
    %c17_i32_33 = arith.constant 17 : i32
    %107 = tpu.dynamic_rotate %105 by %c17_i32_33 dim 1 : vector<8x256xf32>, i32 -> vector<8x256xf32>
    %108 = vector.extract_strided_slice %0 {offsets = [0, 0, 0], sizes = [1, 1, 256], strides = [1, 1, 1]} : vector<9x1x256xf32> to vector<1x1x256xf32>
    %109 = vector.shape_cast %108 : vector<1x1x256xf32> to vector<1x256xf32>
    %110 = vector.broadcast %109 : vector<1x256xf32> to vector<8x256xf32>
    %111 = arith.mulf %107, %110 : vector<8x256xf32>
    %c16_i32_34 = arith.constant 16 : i32
    %112 = tpu.dynamic_rotate %105 by %c16_i32_34 dim 1 : vector<8x256xf32>, i32 -> vector<8x256xf32>
    %113 = vector.extract_strided_slice %0 {offsets = [1, 0, 0], sizes = [1, 1, 256], strides = [1, 1, 1]} : vector<9x1x256xf32> to vector<1x1x256xf32>
    %114 = vector.shape_cast %113 : vector<1x1x256xf32> to vector<1x256xf32>
    %115 = vector.broadcast %114 : vector<1x256xf32> to vector<8x256xf32>
    %116 = arith.mulf %112, %115 : vector<8x256xf32>
    %c15_i32_35 = arith.constant 15 : i32
    %117 = tpu.dynamic_rotate %105 by %c15_i32_35 dim 1 : vector<8x256xf32>, i32 -> vector<8x256xf32>
    %118 = vector.extract_strided_slice %0 {offsets = [2, 0, 0], sizes = [1, 1, 256], strides = [1, 1, 1]} : vector<9x1x256xf32> to vector<1x1x256xf32>
    %119 = vector.shape_cast %118 : vector<1x1x256xf32> to vector<1x256xf32>
    %120 = vector.broadcast %119 : vector<1x256xf32> to vector<8x256xf32>
    %121 = arith.mulf %117, %120 : vector<8x256xf32>
    %c1_i32_36 = arith.constant 1 : i32
    %122 = tpu.dynamic_rotate %105 by %c1_i32_36 dim 1 : vector<8x256xf32>, i32 -> vector<8x256xf32>
    %123 = vector.extract_strided_slice %0 {offsets = [3, 0, 0], sizes = [1, 1, 256], strides = [1, 1, 1]} : vector<9x1x256xf32> to vector<1x1x256xf32>
    %124 = vector.shape_cast %123 : vector<1x1x256xf32> to vector<1x256xf32>
    %125 = vector.broadcast %124 : vector<1x256xf32> to vector<8x256xf32>
    %126 = arith.mulf %122, %125 : vector<8x256xf32>
    %c255_i32_37 = arith.constant 255 : i32
    %127 = tpu.dynamic_rotate %105 by %c255_i32_37 dim 1 : vector<8x256xf32>, i32 -> vector<8x256xf32>
    %128 = vector.extract_strided_slice %0 {offsets = [5, 0, 0], sizes = [1, 1, 256], strides = [1, 1, 1]} : vector<9x1x256xf32> to vector<1x1x256xf32>
    %129 = vector.shape_cast %128 : vector<1x1x256xf32> to vector<1x256xf32>
    %130 = vector.broadcast %129 : vector<1x256xf32> to vector<8x256xf32>
    %131 = arith.mulf %127, %130 : vector<8x256xf32>
    %c241_i32_38 = arith.constant 241 : i32
    %132 = tpu.dynamic_rotate %105 by %c241_i32_38 dim 1 : vector<8x256xf32>, i32 -> vector<8x256xf32>
    %133 = vector.extract_strided_slice %0 {offsets = [6, 0, 0], sizes = [1, 1, 256], strides = [1, 1, 1]} : vector<9x1x256xf32> to vector<1x1x256xf32>
    %134 = vector.shape_cast %133 : vector<1x1x256xf32> to vector<1x256xf32>
    %135 = vector.broadcast %134 : vector<1x256xf32> to vector<8x256xf32>
    %136 = arith.mulf %132, %135 : vector<8x256xf32>
    %c240_i32_39 = arith.constant 240 : i32
    %137 = tpu.dynamic_rotate %105 by %c240_i32_39 dim 1 : vector<8x256xf32>, i32 -> vector<8x256xf32>
    %138 = vector.extract_strided_slice %0 {offsets = [7, 0, 0], sizes = [1, 1, 256], strides = [1, 1, 1]} : vector<9x1x256xf32> to vector<1x1x256xf32>
    %139 = vector.shape_cast %138 : vector<1x1x256xf32> to vector<1x256xf32>
    %140 = vector.broadcast %139 : vector<1x256xf32> to vector<8x256xf32>
    %141 = arith.mulf %137, %140 : vector<8x256xf32>
    %c239_i32_40 = arith.constant 239 : i32
    %142 = tpu.dynamic_rotate %105 by %c239_i32_40 dim 1 : vector<8x256xf32>, i32 -> vector<8x256xf32>
    %143 = vector.extract_strided_slice %0 {offsets = [8, 0, 0], sizes = [1, 1, 256], strides = [1, 1, 1]} : vector<9x1x256xf32> to vector<1x1x256xf32>
    %144 = vector.shape_cast %143 : vector<1x1x256xf32> to vector<1x256xf32>
    %145 = vector.broadcast %144 : vector<1x256xf32> to vector<8x256xf32>
    %146 = arith.mulf %142, %145 : vector<8x256xf32>
    %147 = tpu.concatenate %111, %116, %121, %126, %105, %131, %136, %141, %146 in 0 : vector<8x256xf32>, vector<8x256xf32>, vector<8x256xf32>, vector<8x256xf32>, vector<8x256xf32>, vector<8x256xf32>, vector<8x256xf32>, vector<8x256xf32>, vector<8x256xf32> -> vector<72x256xf32>
    %cst_41 = arith.constant dense<0.000000e+00> : vector<32x256xf32>
    %148 = tpu.matmul %106, %147, %cst_41 {dimension_numbers = #tpu.dot_dimension_numbers<[1], [0], [0], [1], [0, 0, 1, 1], [], []>} : vector<32x72xf32>, vector<72x256xf32>, vector<32x256xf32> -> vector<32x256xf32>
    %c0_42 = arith.constant 0 : index
    %c0_43 = arith.constant 0 : index
    %149 = vector.load %arg8[%c0_42, %c0_43] : memref<16x144xf32, #tpu.memory_space<vmem>>, vector<16x144xf32>
    %c17_i32_44 = arith.constant 17 : i32
    %150 = tpu.dynamic_rotate %2 by %c17_i32_44 dim 1 : vector<16x256xf32>, i32 -> vector<16x256xf32>
    %151 = vector.extract_strided_slice %0 {offsets = [0, 0, 0], sizes = [1, 1, 256], strides = [1, 1, 1]} : vector<9x1x256xf32> to vector<1x1x256xf32>
    %152 = vector.shape_cast %151 : vector<1x1x256xf32> to vector<1x256xf32>
    %153 = vector.broadcast %152 : vector<1x256xf32> to vector<16x256xf32>
    %154 = arith.mulf %150, %153 : vector<16x256xf32>
    %c16_i32_45 = arith.constant 16 : i32
    %155 = tpu.dynamic_rotate %2 by %c16_i32_45 dim 1 : vector<16x256xf32>, i32 -> vector<16x256xf32>
    %156 = vector.extract_strided_slice %0 {offsets = [1, 0, 0], sizes = [1, 1, 256], strides = [1, 1, 1]} : vector<9x1x256xf32> to vector<1x1x256xf32>
    %157 = vector.shape_cast %156 : vector<1x1x256xf32> to vector<1x256xf32>
    %158 = vector.broadcast %157 : vector<1x256xf32> to vector<16x256xf32>
    %159 = arith.mulf %155, %158 : vector<16x256xf32>
    %c15_i32_46 = arith.constant 15 : i32
    %160 = tpu.dynamic_rotate %2 by %c15_i32_46 dim 1 : vector<16x256xf32>, i32 -> vector<16x256xf32>
    %161 = vector.extract_strided_slice %0 {offsets = [2, 0, 0], sizes = [1, 1, 256], strides = [1, 1, 1]} : vector<9x1x256xf32> to vector<1x1x256xf32>
    %162 = vector.shape_cast %161 : vector<1x1x256xf32> to vector<1x256xf32>
    %163 = vector.broadcast %162 : vector<1x256xf32> to vector<16x256xf32>
    %164 = arith.mulf %160, %163 : vector<16x256xf32>
    %c1_i32_47 = arith.constant 1 : i32
    %165 = tpu.dynamic_rotate %2 by %c1_i32_47 dim 1 : vector<16x256xf32>, i32 -> vector<16x256xf32>
    %166 = vector.extract_strided_slice %0 {offsets = [3, 0, 0], sizes = [1, 1, 256], strides = [1, 1, 1]} : vector<9x1x256xf32> to vector<1x1x256xf32>
    %167 = vector.shape_cast %166 : vector<1x1x256xf32> to vector<1x256xf32>
    %168 = vector.broadcast %167 : vector<1x256xf32> to vector<16x256xf32>
    %169 = arith.mulf %165, %168 : vector<16x256xf32>
    %c255_i32_48 = arith.constant 255 : i32
    %170 = tpu.dynamic_rotate %2 by %c255_i32_48 dim 1 : vector<16x256xf32>, i32 -> vector<16x256xf32>
    %171 = vector.extract_strided_slice %0 {offsets = [5, 0, 0], sizes = [1, 1, 256], strides = [1, 1, 1]} : vector<9x1x256xf32> to vector<1x1x256xf32>
    %172 = vector.shape_cast %171 : vector<1x1x256xf32> to vector<1x256xf32>
    %173 = vector.broadcast %172 : vector<1x256xf32> to vector<16x256xf32>
    %174 = arith.mulf %170, %173 : vector<16x256xf32>
    %c241_i32_49 = arith.constant 241 : i32
    %175 = tpu.dynamic_rotate %2 by %c241_i32_49 dim 1 : vector<16x256xf32>, i32 -> vector<16x256xf32>
    %176 = vector.extract_strided_slice %0 {offsets = [6, 0, 0], sizes = [1, 1, 256], strides = [1, 1, 1]} : vector<9x1x256xf32> to vector<1x1x256xf32>
    %177 = vector.shape_cast %176 : vector<1x1x256xf32> to vector<1x256xf32>
    %178 = vector.broadcast %177 : vector<1x256xf32> to vector<16x256xf32>
    %179 = arith.mulf %175, %178 : vector<16x256xf32>
    %c240_i32_50 = arith.constant 240 : i32
    %180 = tpu.dynamic_rotate %2 by %c240_i32_50 dim 1 : vector<16x256xf32>, i32 -> vector<16x256xf32>
    %181 = vector.extract_strided_slice %0 {offsets = [7, 0, 0], sizes = [1, 1, 256], strides = [1, 1, 1]} : vector<9x1x256xf32> to vector<1x1x256xf32>
    %182 = vector.shape_cast %181 : vector<1x1x256xf32> to vector<1x256xf32>
    %183 = vector.broadcast %182 : vector<1x256xf32> to vector<16x256xf32>
    %184 = arith.mulf %180, %183 : vector<16x256xf32>
    %c239_i32_51 = arith.constant 239 : i32
    %185 = tpu.dynamic_rotate %2 by %c239_i32_51 dim 1 : vector<16x256xf32>, i32 -> vector<16x256xf32>
    %186 = vector.extract_strided_slice %0 {offsets = [8, 0, 0], sizes = [1, 1, 256], strides = [1, 1, 1]} : vector<9x1x256xf32> to vector<1x1x256xf32>
    %187 = vector.shape_cast %186 : vector<1x1x256xf32> to vector<1x256xf32>
    %188 = vector.broadcast %187 : vector<1x256xf32> to vector<16x256xf32>
    %189 = arith.mulf %185, %188 : vector<16x256xf32>
    %190 = tpu.concatenate %154, %159, %164, %169, %2, %174, %179, %184, %189 in 0 : vector<16x256xf32>, vector<16x256xf32>, vector<16x256xf32>, vector<16x256xf32>, vector<16x256xf32>, vector<16x256xf32>, vector<16x256xf32>, vector<16x256xf32>, vector<16x256xf32> -> vector<144x256xf32>
    %cst_52 = arith.constant dense<0.000000e+00> : vector<16x256xf32>
    %191 = tpu.matmul %149, %190, %cst_52 {dimension_numbers = #tpu.dot_dimension_numbers<[1], [0], [0], [1], [0, 0, 1, 1], [], []>} : vector<16x144xf32>, vector<144x256xf32>, vector<16x256xf32> -> vector<16x256xf32>
    %192 = tpu.concatenate %2, %191 in 0 : vector<16x256xf32>, vector<16x256xf32> -> vector<32x256xf32>
    %193 = arith.addf %148, %192 : vector<32x256xf32>
    %c0_53 = arith.constant 0 : index
    %c0_54 = arith.constant 0 : index
    %c0_55 = arith.constant 0 : index
    %194 = vector.load %arg10[%c0_53, %c0_54, %c0_55] : memref<1x32x256xf32, #tpu.memory_space<vmem>>, vector<1x32x256xf32>
    %195 = vector.shape_cast %194 : vector<1x32x256xf32> to vector<32x256xf32>
    %196 = vector.shape_cast %193 : vector<32x256xf32> to vector<1x32x256xf32>
    tpu.vector_store %arg10[%c0_53, %c0_54, %c0_55], %196 {strides = array<i32>} : memref<1x32x256xf32, #tpu.memory_space<vmem>>, vector<1x32x256xf32>,
    return
  }
  func.func @transform_0(%arg0: i32) -> (i32, i32, i32) {
    %c0_i32 = arith.constant 0 : i32
    %c0_i32_0 = arith.constant 0 : i32
    %c0_i32_1 = arith.constant 0 : i32
    return %arg0, %c0_i32, %c0_i32_0 : i32, i32, i32
  }
  func.func @transform_1(%arg0: i32) -> (i32, i32) {
    %c0_i32 = arith.constant 0 : i32
    %c0_i32_0 = arith.constant 0 : i32
    %c0_i32_1 = arith.constant 0 : i32
    return %c0_i32, %c0_i32_0 : i32, i32
  }
  func.func @transform_2(%arg0: i32) -> (i32, i32) {
    %c0_i32 = arith.constant 0 : i32
    %c0_i32_0 = arith.constant 0 : i32
    %c0_i32_1 = arith.constant 0 : i32
    return %c0_i32, %c0_i32_0 : i32, i32
  }
  func.func @transform_3(%arg0: i32) -> (i32, i32) {
    %c0_i32 = arith.constant 0 : i32
    %c0_i32_0 = arith.constant 0 : i32
    %c0_i32_1 = arith.constant 0 : i32
    return %c0_i32, %c0_i32_0 : i32, i32
  }
  func.func @transform_4(%arg0: i32) -> (i32, i32) {
    %c0_i32 = arith.constant 0 : i32
    %c0_i32_0 = arith.constant 0 : i32
    %c0_i32_1 = arith.constant 0 : i32
    return %c0_i32, %c0_i32_0 : i32, i32
  }
  func.func @transform_5(%arg0: i32) -> (i32, i32) {
    %c0_i32 = arith.constant 0 : i32
    %c0_i32_0 = arith.constant 0 : i32
    %c0_i32_1 = arith.constant 0 : i32
    return %c0_i32, %c0_i32_0 : i32, i32
  }
  func.func @transform_6(%arg0: i32) -> (i32, i32) {
    %c0_i32 = arith.constant 0 : i32
    %c0_i32_0 = arith.constant 0 : i32
    %c0_i32_1 = arith.constant 0 : i32
    return %c0_i32, %c0_i32_0 : i32, i32
  }
  func.func @transform_7(%arg0: i32) -> (i32, i32) {
    %c0_i32 = arith.constant 0 : i32
    %c0_i32_0 = arith.constant 0 : i32
    %c0_i32_1 = arith.constant 0 : i32
    return %c0_i32, %c0_i32_0 : i32, i32
  }
  func.func @transform_8(%arg0: i32) -> (i32, i32, i32) {
    %c0_i32 = arith.constant 0 : i32
    %c0_i32_0 = arith.constant 0 : i32
    %c0_i32_1 = arith.constant 0 : i32
    %c0_i32_2 = arith.constant 0 : i32
    return %c0_i32, %c0_i32_0, %c0_i32_1 : i32, i32, i32
  }
  func.func @transform_9(%arg0: i32) -> (i32, i32, i32) {
    %c0_i32 = arith.constant 0 : i32
    %c0_i32_0 = arith.constant 0 : i32
    %c0_i32_1 = arith.constant 0 : i32
    return %arg0, %c0_i32, %c0_i32_0 : i32, i32, i32
  }
}

</mosaic_0001>

<llo_original>
// kernel: residual_block_forward.1
$region0: #{residual_block_forward.1}
  #allocation0 [shape = 'u32[]', space=smem, size = 0x4, offset = 0x4, fixed_abs, tag = 'smem constant byte address 0x4 - core index']
  #allocation1 [shape = 'u32[144,128]{1,0:T(1,128)}', space=vmem, size = 0x12000, scoped, tag = 'internal scratch']
  %s0 = inlined_call_operand.vmem [shape: f32[2,16,256], index: 0, kind: input, shape index: {}]
  %s1 = inlined_call_operand.vmem [shape: f32[16,1], index: 1, kind: input, shape index: {}]
  %s2 = inlined_call_operand.vmem [shape: f32[16,1], index: 2, kind: input, shape index: {}]
  %s3 = inlined_call_operand.vmem [shape: f32[8,1], index: 3, kind: input, shape index: {}]
  %s4 = inlined_call_operand.vmem [shape: f32[8,1], index: 4, kind: input, shape index: {}]
  %s5 = inlined_call_operand.vmem [shape: f32[8,144], index: 5, kind: input, shape index: {}]
  %s6 = inlined_call_operand.vmem [shape: f32[32,72], index: 6, kind: input, shape index: {}]
  %s7 = inlined_call_operand.vmem [shape: f32[16,144], index: 7, kind: input, shape index: {}]
  %s8 = inlined_call_operand.vmem [shape: f32[9,1,256], index: 8, kind: input, shape index: {}]
  %s9 = inlined_call_operand.vmem [shape: f32[2,32,256], index: 9, kind: output, shape index: {}]
  %s10 = sld [smem:[#allocation0]]
  $region69: #{residual_block_forward.1} parent=0
    _
  %s12 = ssub.s32 1, %s10
  %s13 = scalar_select 0, %s12, %s10
  loop: start=0, step=1, limit=4
  $region2: #{residual_block_forward.1} parent=0 // loop_pre_header
    _
  $region3: #{residual_block_forward.1} parent=0 // loop_header
    %s15 = sphi 0, %s19
    %p16 = scmp.ge.s32.totalorder %s15, 4
    %s25 = sphi 0, %s27
    %s28 = sphi 0, %s25
    %s29 = sphi 0, %s28
    %s45 = sphi 0, %s29
    %s49 = sphi 0, %s49
    %s51 = sphi 0, %s49
    %s52 = sphi 0, %s51
    %s66 = sphi 0, %s52
    %s70 = sphi 0, %s70
    %s72 = sphi 0, %s70
    %s73 = sphi 0, %s72
    %s87 = sphi 0, %s73
    %s91 = sphi 0, %s91
    %s93 = sphi 0, %s91
    %s94 = sphi 0, %s93
    %s108 = sphi 0, %s94
    %s112 = sphi 0, %s112
    %s114 = sphi 0, %s112
    %s115 = sphi 0, %s114
    %s129 = sphi 0, %s115
    %s133 = sphi 0, %s133
    %s135 = sphi 0, %s133
    %s136 = sphi 0, %s135
    %s150 = sphi 0, %s136
    %s154 = sphi 0, %s154
    %s156 = sphi 0, %s154
    %s157 = sphi 0, %s156
    %s171 = sphi 0, %s157
    %s175 = sphi 0, %s175
    %s177 = sphi 0, %s175
    %s178 = sphi 0, %s177
    %s192 = sphi 0, %s178
    %s196 = sphi 0, %s196
    %s198 = sphi 0, %s196
    %s199 = sphi 0, %s198
    %s213 = sphi 0, %s199
    %s219 = sphi 0, %s221
    %s222 = sphi 0, %s219
    %s223 = sphi 0, %s222
    %s239 = sphi 0, %s223
  $region4: #{residual_block_forward.1} parent=0 // loop_header_branch
    %18 = sbr.rel (%p16) target = $region8
  $region5: #{residual_block_forward.1} parent=0 // loop_body
    %s20 = ssub.s32 %s15, 1
    %s21 = ssub.s32 %s15, 2
    %s22 = sadd.s32 %s15, 1
    %s23 = ssub.s32 %s15, %s22
    %p24 = scmp.eq.s32.totalorder %s23, 0
    %s26 = sadd.s32 %s25, 1
    %s27 = scalar_select %p24, %s25, %s26
    %p30 = pneg %p24
    %p31 = scmp.eq.s32.totalorder %s15, 1
    %p32 = por %p30, %p31
    %p33 = scmp.ne.s32.totalorder %s25, %s28
    %p34 = scmp.eq.s32.totalorder %s15, 0
    %p35 = por %p33, %p34
    %p36 = scmp.ne.s32.totalorder %s25, %s28
    %p37 = scmp.eq.s32.totalorder %s20, 1
    %p38 = por %p36, %p37
    %p39 = scmp.ne.s32.totalorder %s28, %s29
    %p40 = scmp.eq.s32.totalorder %s20, 0
    %p41 = por %p39, %p40
    %p42 = scmp.ne.s32.totalorder %s28, %s29
    %p43 = scmp.eq.s32.totalorder %s21, 1
    %p44 = por %p42, %p43
    %p46 = scmp.ne.s32.totalorder %s29, %s45
    %p47 = scmp.eq.s32.totalorder %s21, 0
    %p48 = por %p46, %p47
    %s50 = sadd.s32 %s49, 1
    %p53 = scmp.eq.s32.totalorder %s15, 1
    %p54 = scmp.ne.s32.totalorder %s49, %s51
    %p55 = scmp.eq.s32.totalorder %s15, 0
    %p56 = por %p54, %p55
    %p57 = scmp.ne.s32.totalorder %s49, %s51
    %p58 = scmp.eq.s32.totalorder %s20, 1
    %p59 = por %p57, %p58
    %p60 = scmp.ne.s32.totalorder %s51, %s52
    %p61 = scmp.eq.s32.totalorder %s20, 0
    %p62 = por %p60, %p61
    %p63 = scmp.ne.s32.totalorder %s51, %s52
    %p64 = scmp.eq.s32.totalorder %s21, 1
    %p65 = por %p63, %p64
    %p67 = scmp.ne.s32.totalorder %s52, %s66
    %p68 = scmp.eq.s32.totalorder %s21, 0
    %p69 = por %p67, %p68
    %s71 = sadd.s32 %s70, 1
    %p74 = scmp.eq.s32.totalorder %s15, 1
    %p75 = scmp.ne.s32.totalorder %s70, %s72
    %p76 = scmp.eq.s32.totalorder %s15, 0
    %p77 = por %p75, %p76
    %p78 = scmp.ne.s32.totalorder %s70, %s72
    %p79 = scmp.eq.s32.totalorder %s20, 1
    %p80 = por %p78, %p79
    %p81 = scmp.ne.s32.totalorder %s72, %s73
    %p82 = scmp.eq.s32.totalorder %s20, 0
    %p83 = por %p81, %p82
    %p84 = scmp.ne.s32.totalorder %s72, %s73
    %p85 = scmp.eq.s32.totalorder %s21, 1
    %p86 = por %p84, %p85
    %p88 = scmp.ne.s32.totalorder %s73, %s87
    %p89 = scmp.eq.s32.totalorder %s21, 0
    %p90 = por %p88, %p89
    %s92 = sadd.s32 %s91, 1
    %p95 = scmp.eq.s32.totalorder %s15, 1
    %p96 = scmp.ne.s32.totalorder %s91, %s93
    %p97 = scmp.eq.s32.totalorder %s15, 0
    %p98 = por %p96, %p97
    %p99 = scmp.ne.s32.totalorder %s91, %s93
    %p100 = scmp.eq.s32.totalorder %s20, 1
    %p101 = por %p99, %p100
    %p102 = scmp.ne.s32.totalorder %s93, %s94
    %p103 = scmp.eq.s32.totalorder %s20, 0
    %p104 = por %p102, %p103
    %p105 = scmp.ne.s32.totalorder %s93, %s94
    %p106 = scmp.eq.s32.totalorder %s21, 1
    %p107 = por %p105, %p106
    %p109 = scmp.ne.s32.totalorder %s94, %s108
    %p110 = scmp.eq.s32.totalorder %s21, 0
    %p111 = por %p109, %p110
    %s113 = sadd.s32 %s112, 1
    %p116 = scmp.eq.s32.totalorder %s15, 1
    %p117 = scmp.ne.s32.totalorder %s112, %s114
    %p118 = scmp.eq.s32.totalorder %s15, 0
    %p119 = por %p117, %p118
    %p120 = scmp.ne.s32.totalorder %s112, %s114
    %p121 = scmp.eq.s32.totalorder %s20, 1
    %p122 = por %p120, %p121
    %p123 = scmp.ne.s32.totalorder %s114, %s115
    %p124 = scmp.eq.s32.totalorder %s20, 0
    %p125 = por %p123, %p124
    %p126 = scmp.ne.s32.totalorder %s114, %s115
    %p127 = scmp.eq.s32.totalorder %s21, 1
    %p128 = por %p126, %p127
    %p130 = scmp.ne.s32.totalorder %s115, %s129
    %p131 = scmp.eq.s32.totalorder %s21, 0
    %p132 = por %p130, %p131
    %s134 = sadd.s32 %s133, 1
    %p137 = scmp.eq.s32.totalorder %s15, 1
    %p138 = scmp.ne.s32.totalorder %s133, %s135
    %p139 = scmp.eq.s32.totalorder %s15, 0
    %p140 = por %p138, %p139
    %p141 = scmp.ne.s32.totalorder %s133, %s135
    %p142 = scmp.eq.s32.totalorder %s20, 1
    %p143 = por %p141, %p142
    %p144 = scmp.ne.s32.totalorder %s135, %s136
    %p145 = scmp.eq.s32.totalorder %s20, 0
    %p146 = por %p144, %p145
    %p147 = scmp.ne.s32.totalorder %s135, %s136
    %p148 = scmp.eq.s32.totalorder %s21, 1
    %p149 = por %p147, %p148
    %p151 = scmp.ne.s32.totalorder %s136, %s150
    %p152 = scmp.eq.s32.totalorder %s21, 0
    %p153 = por %p151, %p152
    %s155 = sadd.s32 %s154, 1
    %p158 = scmp.eq.s32.totalorder %s15, 1
    %p159 = scmp.ne.s32.totalorder %s154, %s156
    %p160 = scmp.eq.s32.totalorder %s15, 0
    %p161 = por %p159, %p160
    %p162 = scmp.ne.s32.totalorder %s154, %s156
    %p163 = scmp.eq.s32.totalorder %s20, 1
    %p164 = por %p162, %p163
    %p165 = scmp.ne.s32.totalorder %s156, %s157
    %p166 = scmp.eq.s32.totalorder %s20, 0
    %p167 = por %p165, %p166
    %p168 = scmp.ne.s32.totalorder %s156, %s157
    %p169 = scmp.eq.s32.totalorder %s21, 1
    %p170 = por %p168, %p169
    %p172 = scmp.ne.s32.totalorder %s157, %s171
    %p173 = scmp.eq.s32.totalorder %s21, 0
    %p174 = por %p172, %p173
    %s176 = sadd.s32 %s175, 1
    %p179 = scmp.eq.s32.totalorder %s15, 1
    %p180 = scmp.ne.s32.totalorder %s175, %s177
    %p181 = scmp.eq.s32.totalorder %s15, 0
    %p182 = por %p180, %p181
    %p183 = scmp.ne.s32.totalorder %s175, %s177
    %p184 = scmp.eq.s32.totalorder %s20, 1
    %p185 = por %p183, %p184
    %p186 = scmp.ne.s32.totalorder %s177, %s178
    %p187 = scmp.eq.s32.totalorder %s20, 0
    %p188 = por %p186, %p187
    %p189 = scmp.ne.s32.totalorder %s177, %s178
    %p190 = scmp.eq.s32.totalorder %s21, 1
    %p191 = por %p189, %p190
    %p193 = scmp.ne.s32.totalorder %s178, %s192
    %p194 = scmp.eq.s32.totalorder %s21, 0
    %p195 = por %p193, %p194
    %s197 = sadd.s32 %s196, 1
    %p200 = scmp.eq.s32.totalorder %s15, 1
    %p201 = scmp.ne.s32.totalorder %s196, %s198
    %p202 = scmp.eq.s32.totalorder %s15, 0
    %p203 = por %p201, %p202
    %p204 = scmp.ne.s32.totalorder %s196, %s198
    %p205 = scmp.eq.s32.totalorder %s20, 1
    %p206 = por %p204, %p205
    %p207 = scmp.ne.s32.totalorder %s198, %s199
    %p208 = scmp.eq.s32.totalorder %s20, 0
    %p209 = por %p207, %p208
    %p210 = scmp.ne.s32.totalorder %s198, %s199
    %p211 = scmp.eq.s32.totalorder %s21, 1
    %p212 = por %p210, %p211
    %p214 = scmp.ne.s32.totalorder %s199, %s213
    %p215 = scmp.eq.s32.totalorder %s21, 0
    %p216 = por %p214, %p215
    %s217 = ssub.s32 %s15, %s22
    %p218 = scmp.eq.s32.totalorder %s217, 0
    %s220 = sadd.s32 %s219, 1
    %s221 = scalar_select %p218, %s219, %s220
    %p224 = pneg %p218
    %p225 = scmp.eq.s32.totalorder %s15, 1
    %p226 = por %p224, %p225
    %p227 = scmp.ne.s32.totalorder %s219, %s222
    %p228 = scmp.eq.s32.totalorder %s15, 0
    %p229 = por %p227, %p228
    %p230 = scmp.ne.s32.totalorder %s219, %s222
    %p231 = scmp.eq.s32.totalorder %s20, 1
    %p232 = por %p230, %p231
    %p233 = scmp.ne.s32.totalorder %s222, %s223
    %p234 = scmp.eq.s32.totalorder %s20, 0
    %p235 = por %p233, %p234
    %p236 = scmp.ne.s32.totalorder %s222, %s223
    %p237 = scmp.eq.s32.totalorder %s21, 1
    %p238 = por %p236, %p237
    %p240 = scmp.ne.s32.totalorder %s223, %s239
    %p241 = scmp.eq.s32.totalorder %s21, 0
    %p242 = por %p240, %p241
    %p243 = scmp.le.s32.totalorder 1, %s15
    %p244 = scmp.lt.s32.totalorder %s15, 3
    %p245 = pnand %p243, %p244
    %p246 = pneg %p245
    // Predicated region
    $region9: #{residual_block_forward.1} parent=5 // pred_check
      _
    $region10: #{residual_block_forward.1} parent=5 // pred_check_branch
      %248 = sbr.rel (%p245) target = $region12
    $region11: #{residual_block_forward.1} parent=5 // pred_region
      %s249 = ssub.s32 %s15, 1
      // Predicated region
      $region13: #{residual_block_forward.1} parent=11 // pred_check
        %p250 = pneg %p62
      $region14: #{residual_block_forward.1} parent=11 // pred_check_branch
        %252 = sbr.rel (%p250) target = $region16
      $region15: #{residual_block_forward.1} parent=11 // pred_region
        _
      $region16: #{residual_block_forward.1} parent=11 // pred_fallthru
        _
      // Predicated region
      $region17: #{residual_block_forward.1} parent=11 // pred_check
        %p253 = pneg %p83
      $region18: #{residual_block_forward.1} parent=11 // pred_check_branch
        %255 = sbr.rel (%p253) target = $region20
      $region19: #{residual_block_forward.1} parent=11 // pred_region
        _
      $region20: #{residual_block_forward.1} parent=11 // pred_fallthru
        _
      // Predicated region
      $region21: #{residual_block_forward.1} parent=11 // pred_check
        %p256 = pneg %p104
      $region22: #{residual_block_forward.1} parent=11 // pred_check_branch
        %258 = sbr.rel (%p256) target = $region24
      $region23: #{residual_block_forward.1} parent=11 // pred_region
        _
      $region24: #{residual_block_forward.1} parent=11 // pred_fallthru
        _
      // Predicated region
      $region25: #{residual_block_forward.1} parent=11 // pred_check
        %p259 = pneg %p125
      $region26: #{residual_block_forward.1} parent=11 // pred_check_branch
        %261 = sbr.rel (%p259) target = $region28
      $region27: #{residual_block_forward.1} parent=11 // pred_region
        _
      $region28: #{residual_block_forward.1} parent=11 // pred_fallthru
        _
      // Predicated region
      $region29: #{residual_block_forward.1} parent=11 // pred_check
        %p262 = pneg %p146
      $region30: #{residual_block_forward.1} parent=11 // pred_check_branch
        %264 = sbr.rel (%p262) target = $region32
      $region31: #{residual_block_forward.1} parent=11 // pred_region
        _
      $region32: #{residual_block_forward.1} parent=11 // pred_fallthru
        _
      // Predicated region
      $region33: #{residual_block_forward.1} parent=11 // pred_check
        %p265 = pneg %p167
      $region34: #{residual_block_forward.1} parent=11 // pred_check_branch
        %267 = sbr.rel (%p265) target = $region36
      $region35: #{residual_block_forward.1} parent=11 // pred_region
        _
      $region36: #{residual_block_forward.1} parent=11 // pred_fallthru
        _
      // Predicated region
      $region37: #{residual_block_forward.1} parent=11 // pred_check
        %p268 = pneg %p188
      $region38: #{residual_block_forward.1} parent=11 // pred_check_branch
        %270 = sbr.rel (%p268) target = $region40
      $region39: #{residual_block_forward.1} parent=11 // pred_region
        _
      $region40: #{residual_block_forward.1} parent=11 // pred_fallthru
        _
      // Predicated region
      $region41: #{residual_block_forward.1} parent=11 // pred_check
        %p271 = pneg %p209
      $region42: #{residual_block_forward.1} parent=11 // pred_check_branch
        %273 = sbr.rel (%p271) target = $region44
      $region43: #{residual_block_forward.1} parent=11 // pred_region
        _
      $region44: #{residual_block_forward.1} parent=11 // pred_fallthru
        _
    $region12: #{residual_block_forward.1} parent=5 // pred_fallthru
      _
    %p274 = scmp.lt.s32.totalorder %s15, 2
    // Predicated region
    $region45: #{residual_block_forward.1} parent=5 // pred_check
      %p275 = pneg %p274
    $region46: #{residual_block_forward.1} parent=5 // pred_check_branch
      %277 = sbr.rel (%p275) target = $region48
    $region47: #{residual_block_forward.1} parent=5 // pred_region
      // Predicated region
      $region49: #{residual_block_forward.1} parent=47 // pred_check
        %p278 = pneg %p35
      $region50: #{residual_block_forward.1} parent=47 // pred_check_branch
        %280 = sbr.rel (%p278) target = $region52
      $region51: #{residual_block_forward.1} parent=47 // pred_region
        %p281 = scmp.lt.s32.totalorder %s15, 1
        %s282 = scalar_select %p281, %s15, 1
        %s283 = smul.addr %s282, 4
        %s284 = smul.addr %s283, 8
        %s285 = scalar_lea.vmem %s0, %s284
      $region52: #{residual_block_forward.1} parent=47 // pred_fallthru
        _
    $region48: #{residual_block_forward.1} parent=5 // pred_fallthru
      _
    %p286 = scmp.le.s32.totalorder 1, %s15
    %p287 = scmp.lt.s32.totalorder %s15, 3
    %p288 = pnand %p286, %p287
    %p289 = pneg %p288
    // Predicated region
    $region53: #{residual_block_forward.1} parent=5 // pred_check
      _
    $region54: #{residual_block_forward.1} parent=5 // pred_check_branch
      %291 = sbr.rel (%p288) target = $region56
    $region55: #{residual_block_forward.1} parent=5 // pred_region
      %s292 = ssub.s32 %s15, 1
      %p293 = scmp.lt.s32.totalorder %s20, 1
      %s294 = scalar_select %p293, %s20, 1
      %s295 = smul.addr %s294, 4
      %s296 = smul.addr %s295, 8
      %s297 = scalar_lea.vmem %s0, %s296
      %p298 = pneg %p41
      %p299 = pneg %p38
      %p300 = pneg %p62
      %p301 = pneg %p59
      %p302 = pneg %p83
      %p303 = pneg %p80
      %p304 = pneg %p104
      %p305 = pneg %p101
      %p306 = pneg %p125
      %p307 = pneg %p122
      %p308 = pneg %p146
      %p309 = pneg %p143
      %p310 = pneg %p167
      %p311 = pneg %p164
      %p312 = pneg %p188
      %p313 = pneg %p185
      %p314 = pneg %p209
      %p315 = pneg %p206
      %p316 = pneg %p235
      %p317 = pneg %p232
      %p318 = scmp.lt.s32.totalorder %s20, 1
      %s319 = scalar_select %p318, %s20, 1
      %s320 = smul.addr %s319, 8
      %s321 = smul.addr %s320, 8
      %s322 = scalar_lea.vmem %s9, %s321
      %p323 = scmp.lt.s32.totalorder %s20, 1
      %s324 = scalar_select %p323, %s20, 1
      %s325 = smul.addr %s324, 4
      %s326 = smul.addr %s325, 8
      %s327 = scalar_lea.vmem %s0, %s326
      %p328 = scmp.lt.s32.totalorder %s20, 1
      %s329 = scalar_select %p328, %s20, 1
      %s330 = smul.addr %s329, 8
      %s331 = smul.addr %s330, 8
      %s332 = scalar_lea.vmem %s9, %s331
      %v333 = vld [vmem:[%s8] sm:$0x3]
      %v334 = vld [vmem:[%s8 + $0x2] sm:$0x3]
      %v335 = vld [vmem:[%s8 + $0x4] sm:$0x3]
      %v336 = vld [vmem:[%s8 + $0x6] sm:$0x3]
      %v337 = vld [vmem:[%s8 + $0xa] sm:$0x3]
      %v338 = vld [vmem:[%s8 + $0xc] sm:$0x3]
      %v339 = vld [vmem:[%s8 + $0xe] sm:$0x3]
      %v340 = vld [vmem:[%s8 + $0x10] sm:$0x3]
      %v341 = vld [vmem:[%s327] sm:$0xff]
      %v342 = vld [vmem:[%s327 + $0x8] sm:$0xff]
      %v343 = vld [vmem:[%s327 + $0x10] sm:$0xff]
      %v344 = vld [vmem:[%s327 + $0x18] sm:$0xff]
      %v345 = vld [vmem:[%s1] sm:$0xff]
      %v346 = vld [vmem:[%s1 + $0x8] sm:$0xff]
      %v347 = vld [vmem:[%s2] sm:$0xff]
      %v348 = vld [vmem:[%s2 + $0x8] sm:$0xff]
      %v349 = vadd.f32 %v341, %v342
      %350 = vadd.xlane.f32.xlu0 %v349
      %v351 = vpop.xlane.xlu0 %350
      %v352 = vadd.f32 %v343, %v344
      %353 = vadd.xlane.f32.xlu0 %v352
      %v354 = vpop.xlane.xlu0 %353
      %v355 = vmul.f32 %v351, 0.00390625
      %v356 = vmul.f32 %v354, 0.00390625
      %v357 = vsub.f32 %v341, %v355
      %v358 = vsub.f32 %v342, %v355
      %v359 = vsub.f32 %v343, %v356
      %v360 = vsub.f32 %v344, %v356
      %v361 = vmul.f32 %v357, %v357
      %v362 = vmul.f32 %v358, %v358
      %v363 = vmul.f32 %v359, %v359
      %v364 = vmul.f32 %v360, %v360
      %v365 = vadd.f32 %v361, %v362
      %366 = vadd.xlane.f32.xlu0 %v365
      %v367 = vpop.xlane.xlu0 %366
      %v368 = vadd.f32 %v363, %v364
      %369 = vadd.xlane.f32.xlu0 %v368
      %v370 = vpop.xlane.xlu0 %369
      %v371 = vmul.f32 %v367, 0.00390625
      %v372 = vmul.f32 %v370, 0.00390625
      %v373 = vadd.f32 %v371, 1e-05
      %v374 = vadd.f32 %v372, 1e-05
      %v375 = vrsqrt.pop %v373
      %v376 = vrsqrt.pop %v374
      %v377 = vmul.f32 %v357, %v375
      %v378 = vmul.f32 %v358, %v375
      %v379 = vmul.f32 %v359, %v376
      %v380 = vmul.f32 %v360, %v376
      %382 = vset.pattern.permute.xlu0 0
      %383 = vperm.xlu0 %382, %v345
      %v384 = vpop.permute.xlu0 %383
      %387 = vset.pattern.permute.xlu0 0
      %388 = vperm.xlu0 %387, %v346
      %v389 = vpop.permute.xlu0 %388
      %v391 = vmul.f32 %v377, %v384
      %v392 = vmul.f32 %v378, %v384
      %v393 = vmul.f32 %v379, %v389
      %v394 = vmul.f32 %v380, %v389
      %396 = vset.pattern.permute.xlu0 0
      %397 = vperm.xlu0 %396, %v347
      %v398 = vpop.permute.xlu0 %397
      %401 = vset.pattern.permute.xlu0 0
      %402 = vperm.xlu0 %401, %v348
      %v403 = vpop.permute.xlu0 %402
      %v405 = vadd.f32 %v391, %v398
      %v406 = vadd.f32 %v392, %v398
      %v407 = vadd.f32 %v393, %v403
      %v408 = vadd.f32 %v394, %v403
      %v409 = vsub.f32 0.0, %v405
      %v410 = vsub.f32 0.0, %v406
      %v411 = vsub.f32 0.0, %v407
      %v412 = vsub.f32 0.0, %v408
      %v413 = vmul.f32 %v409, 1.442695
      %v414 = vpow.pop %v413
      %v415 = vmul.f32 %v410, 1.442695
      %v416 = vpow.pop %v415
      %v417 = vmul.f32 %v411, 1.442695
      %v418 = vpow.pop %v417
      %v419 = vmul.f32 %v412, 1.442695
      %v420 = vpow.pop %v419
      %v421 = vadd.f32 %v414, 1.0
      %v422 = vadd.f32 %v416, 1.0
      %v423 = vadd.f32 %v418, 1.0
      %v424 = vadd.f32 %v420, 1.0
      %v425 = vrcp.pop %v421
      %v426 = vmul.f32 1.0, %v425
      %v427 = vrcp.pop %v422
      %v428 = vmul.f32 1.0, %v427
      %v429 = vrcp.pop %v423
      %v430 = vmul.f32 1.0, %v429
      %v431 = vrcp.pop %v424
      %v432 = vmul.f32 1.0, %v431
      %v433 = vmul.f32 %v405, %v426
      %v434 = vmul.f32 %v406, %v428
      %v435 = vmul.f32 %v407, %v430
      %v436 = vmul.f32 %v408, %v432
      %v437 = vld [vmem:[%s5] sm:$0xff]
      %v438 = vld [vmem:[%s5 + $0x8] sm:$0xff]
      %439 = vrot.lane.b32.xlu0 %v433, 17
      %v440 = vpop.permute.xlu0 %439
      %441 = vrot.lane.b32.xlu0 %v435, 17
      %v442 = vpop.permute.xlu0 %441
      %443 = vrot.lane.b32.xlu0 %v434, 17
      %v444 = vpop.permute.xlu0 %443
      %445 = vrot.lane.b32.xlu0 %v436, 17
      %v446 = vpop.permute.xlu0 %445
      %v447 = vlaneseq
      %v448 = vand.u32 %v447, 127
      %vm449 = vcmp.lt.s32.totalorder %v448, 17
      %v450 = vsel %vm449, %v440, %v444
      %v451 = vsel %vm449, %v442, %v446
      %v452 = vsel %vm449, %v444, %v440
      %v453 = vsel %vm449, %v446, %v442
      %v455 = vlaneseq
      %v456 = vshrl.u32 %v455, 7
      %v457 = vsub.s32 0, %v456
      %v458 = vrot.slane %v333, %v457
      %v459 = vlaneseq
      %v460 = vshrl.u32 %v459, 7
      %v461 = vsub.s32 1, %v460
      %v462 = vrot.slane %v333, %v461
      %v465 = vmul.f32 %v452, %v458
      %v466 = vmul.f32 %v450, %v462
      %v467 = vmul.f32 %v453, %v458
      %v468 = vmul.f32 %v451, %v462
      %469 = vrot.lane.b32.xlu0 %v433, 16
      %v470 = vpop.permute.xlu0 %469
      %471 = vrot.lane.b32.xlu0 %v435, 16
      %v472 = vpop.permute.xlu0 %471
      %473 = vrot.lane.b32.xlu0 %v434, 16
      %v474 = vpop.permute.xlu0 %473
      %475 = vrot.lane.b32.xlu0 %v436, 16
      %v476 = vpop.permute.xlu0 %475
      %vm477 = vcmp.lt.s32.totalorder %v448, 16
      %v478 = vsel %vm477, %v470, %v474
      %v479 = vsel %vm477, %v472, %v476
      %v480 = vsel %vm477, %v474, %v470
      %v481 = vsel %vm477, %v476, %v472
      %v483 = vlaneseq
      %v484 = vshrl.u32 %v483, 7
      %v485 = vsub.s32 0, %v484
      %v486 = vrot.slane %v334, %v485
      %v487 = vlaneseq
      %v488 = vshrl.u32 %v487, 7
      %v489 = vsub.s32 1, %v488
      %v490 = vrot.slane %v334, %v489
      %v493 = vmul.f32 %v480, %v486
      %v494 = vmul.f32 %v478, %v490
      %v495 = vmul.f32 %v481, %v486
      %v496 = vmul.f32 %v479, %v490
      %497 = vrot.lane.b32.xlu0 %v433, 15
      %v498 = vpop.permute.xlu0 %497
      %499 = vrot.lane.b32.xlu0 %v435, 15
      %v500 = vpop.permute.xlu0 %499
      %501 = vrot.lane.b32.xlu0 %v434, 15
      %v502 = vpop.permute.xlu0 %501
      %503 = vrot.lane.b32.xlu0 %v436, 15
      %v504 = vpop.permute.xlu0 %503
      %vm505 = vcmp.lt.s32.totalorder %v448, 15
      %v506 = vsel %vm505, %v498, %v502
      %v507 = vsel %vm505, %v500, %v504
      %v508 = vsel %vm505, %v502, %v498
      %v509 = vsel %vm505, %v504, %v500
      %v511 = vlaneseq
      %v512 = vshrl.u32 %v511, 7
      %v513 = vsub.s32 0, %v512
      %v514 = vrot.slane %v335, %v513
      %v515 = vlaneseq
      %v516 = vshrl.u32 %v515, 7
      %v517 = vsub.s32 1, %v516
      %v518 = vrot.slane %v335, %v517
      %v521 = vmul.f32 %v508, %v514
      %v522 = vmul.f32 %v506, %v518
      %v523 = vmul.f32 %v509, %v514
      %v524 = vmul.f32 %v507, %v518
      %525 = vrot.lane.b32.xlu0 %v433, 1
      %v526 = vpop.permute.xlu0 %525
      %527 = vrot.lane.b32.xlu0 %v435, 1
      %v528 = vpop.permute.xlu0 %527
      %529 = vrot.lane.b32.xlu0 %v434, 1
      %v530 = vpop.permute.xlu0 %529
      %531 = vrot.lane.b32.xlu0 %v436, 1
      %v532 = vpop.permute.xlu0 %531
      %vm533 = vcmp.lt.s32.totalorder %v448, 1
      %v534 = vsel %vm533, %v526, %v530
      %v535 = vsel %vm533, %v528, %v532
      %v536 = vsel %vm533, %v530, %v526
      %v537 = vsel %vm533, %v532, %v528
      %v539 = vlaneseq
      %v540 = vshrl.u32 %v539, 7
      %v541 = vsub.s32 0, %v540
      %v542 = vrot.slane %v336, %v541
      %v543 = vlaneseq
      %v544 = vshrl.u32 %v543, 7
      %v545 = vsub.s32 1, %v544
      %v546 = vrot.slane %v336, %v545
      %v549 = vmul.f32 %v536, %v542
      %v550 = vmul.f32 %v534, %v546
      %v551 = vmul.f32 %v537, %v542
      %v552 = vmul.f32 %v535, %v546
      %553 = vrot.lane.b32.xlu0 %v433, 127
      %v554 = vpop.permute.xlu0 %553
      %555 = vrot.lane.b32.xlu0 %v435, 127
      %v556 = vpop.permute.xlu0 %555
      %557 = vrot.lane.b32.xlu0 %v434, 127
      %v558 = vpop.permute.xlu0 %557
      %559 = vrot.lane.b32.xlu0 %v436, 127
      %v560 = vpop.permute.xlu0 %559
      %vm561 = vcmp.lt.s32.totalorder %v448, 127
      %v562 = vsel %vm561, %v554, %v558
      %v563 = vsel %vm561, %v556, %v560
      %v564 = vsel %vm561, %v558, %v554
      %v565 = vsel %vm561, %v560, %v556
      %v567 = vlaneseq
      %v568 = vshrl.u32 %v567, 7
      %v569 = vsub.s32 0, %v568
      %v570 = vrot.slane %v337, %v569
      %v571 = vlaneseq
      %v572 = vshrl.u32 %v571, 7
      %v573 = vsub.s32 1, %v572
      %v574 = vrot.slane %v337, %v573
      %v577 = vmul.f32 %v562, %v570
      %v578 = vmul.f32 %v564, %v574
      %v579 = vmul.f32 %v563, %v570
      %v580 = vmul.f32 %v565, %v574
      %581 = vrot.lane.b32.xlu0 %v433, 113
      %v582 = vpop.permute.xlu0 %581
      %583 = vrot.lane.b32.xlu0 %v435, 113
      %v584 = vpop.permute.xlu0 %583
      %585 = vrot.lane.b32.xlu0 %v434, 113
      %v586 = vpop.permute.xlu0 %585
      %587 = vrot.lane.b32.xlu0 %v436, 113
      %v588 = vpop.permute.xlu0 %587
      %vm589 = vcmp.lt.s32.totalorder %v448, 113
      %v590 = vsel %vm589, %v582, %v586
      %v591 = vsel %vm589, %v584, %v588
      %v592 = vsel %vm589, %v586, %v582
      %v593 = vsel %vm589, %v588, %v584
      %v595 = vlaneseq
      %v596 = vshrl.u32 %v595, 7
      %v597 = vsub.s32 0, %v596
      %v598 = vrot.slane %v338, %v597
      %v599 = vlaneseq
      %v600 = vshrl.u32 %v599, 7
      %v601 = vsub.s32 1, %v600
      %v602 = vrot.slane %v338, %v601
      %v605 = vmul.f32 %v590, %v598
      %v606 = vmul.f32 %v592, %v602
      %v607 = vmul.f32 %v591, %v598
      %v608 = vmul.f32 %v593, %v602
      %609 = vrot.lane.b32.xlu0 %v433, 112
      %v610 = vpop.permute.xlu0 %609
      %611 = vrot.lane.b32.xlu0 %v435, 112
      %v612 = vpop.permute.xlu0 %611
      %613 = vrot.lane.b32.xlu0 %v434, 112
      %v614 = vpop.permute.xlu0 %613
      %615 = vrot.lane.b32.xlu0 %v436, 112
      %v616 = vpop.permute.xlu0 %615
      %vm617 = vcmp.lt.s32.totalorder %v448, 112
      %v618 = vsel %vm617, %v610, %v614
      %v619 = vsel %vm617, %v612, %v616
      %v620 = vsel %vm617, %v614, %v610
      %v621 = vsel %vm617, %v616, %v612
      %v623 = vlaneseq
      %v624 = vshrl.u32 %v623, 7
      %v625 = vsub.s32 0, %v624
      %v626 = vrot.slane %v339, %v625
      %v627 = vlaneseq
      %v628 = vshrl.u32 %v627, 7
      %v629 = vsub.s32 1, %v628
      %v630 = vrot.slane %v339, %v629
      %v633 = vmul.f32 %v618, %v626
      %v634 = vmul.f32 %v620, %v630
      %v635 = vmul.f32 %v619, %v626
      %v636 = vmul.f32 %v621, %v630
      %637 = vrot.lane.b32.xlu0 %v433, 111
      %v638 = vpop.permute.xlu0 %637
      %639 = vrot.lane.b32.xlu0 %v435, 111
      %v640 = vpop.permute.xlu0 %639
      %641 = vrot.lane.b32.xlu0 %v434, 111
      %v642 = vpop.permute.xlu0 %641
      %643 = vrot.lane.b32.xlu0 %v436, 111
      %v644 = vpop.permute.xlu0 %643
      %vm645 = vcmp.lt.s32.totalorder %v448, 111
      %v646 = vsel %vm645, %v638, %v642
      %v647 = vsel %vm645, %v640, %v644
      %v648 = vsel %vm645, %v642, %v638
      %v649 = vsel %vm645, %v644, %v640
      %v651 = vlaneseq
      %v652 = vshrl.u32 %v651, 7
      %v653 = vsub.s32 0, %v652
      %v654 = vrot.slane %v340, %v653
      %v655 = vlaneseq
      %v656 = vshrl.u32 %v655, 7
      %v657 = vsub.s32 1, %v656
      %v658 = vrot.slane %v340, %v657
      %v661 = vmul.f32 %v646, %v654
      %v662 = vmul.f32 %v648, %v658
      %v663 = vmul.f32 %v647, %v654
      %v664 = vmul.f32 %v649, %v658
      %vm665 = vcmask 130048
      %v667 = vsel %vm665, %v438, 0
      %669 = vmatprep.subr.mxu0 %v466
      %670 = vmatpush1.msra.mxu0 %v465
      %671 = vmatprep.subr.mxu0 %v468
      %672 = vmatpush1.msra.mxu0 %v467
      %673 = vmatprep.subr.mxu0 %v494
      %674 = vmatpush1.msra.mxu0 %v493
      %675 = vmatprep.subr.mxu0 %v496
      %676 = vmatpush1.msra.mxu0 %v495
      %677 = vmatprep.subr.mxu0 %v522
      %678 = vmatpush1.msra.mxu0 %v521
      %679 = vmatprep.subr.mxu0 %v524
      %680 = vmatpush1.msra.mxu0 %v523
      %681 = vmatprep.subr.mxu0 %v550
      %682 = vmatpush1.msra.mxu0 %v549
      %683 = vmatprep.subr.mxu0 %v552
      %684 = vmatpush1.msra.mxu0 %v551
      %685 = vmatprep.subr.mxu0 %v434
      %686 = vmatpush1.msra.mxu0 %v433
      %687 = vmatprep.subr.mxu0 %v436
      %688 = vmatpush1.msra.mxu0 %v435
      %689 = vmatprep.subr.mxu0 %v578
      %690 = vmatpush1.msra.mxu0 %v577
      %691 = vmatprep.subr.mxu0 %v580
      %692 = vmatpush1.msra.mxu0 %v579
      %693 = vmatprep.subr.mxu0 %v606
      %694 = vmatpush1.msra.mxu0 %v605
      %695 = vmatprep.subr.mxu0 %v608
      %696 = vmatpush1.msra.mxu0 %v607
      %697 = vmatprep.subr.mxu0 %v634
      %698 = vmatpush1.msra.mxu0 %v633
      %699 = vmatprep.subr.mxu0 %v636
      %700 = vmatpush1.msra.mxu0 %v635
      %701 = vmatprep.subr.mxu0 %v662
      %702 = vmatpush1.msra.mxu0 %v661
      %703 = vmatprep.subr.mxu0 %v664
      %704 = vmatpush1.msra.mxu0 %v663
      %705 = vmatprep.subr.mxu0 0.0
      %706 = vmatpush1.msra.mxu0 0.0
      %707 = vmatprep.subr.mxu0 0.0
      %708 = vmatpush1.msra.mxu0 0.0
      %709 = vmatprep.subr.mxu0 0.0
      %710 = vmatpush1.msra.mxu0 0.0
      %711 = vmatprep.subr.mxu0 0.0
      %712 = vmatpush1.msra.mxu0 0.0
      %713 = vmatprep.subr.mxu0 0.0
      %714 = vmatpush1.msra.mxu0 0.0
      %715 = vmatprep.subr.mxu0 0.0
      %716 = vmatpush1.msra.mxu0 0.0
      %717 = vmatprep.subr.mxu0 0.0
      %718 = vmatpush1.msra.mxu0 0.0
      %719 = vmatprep.subr.mxu0 0.0
      %720 = vmatpush1.msra.mxu0 0.0
      %721 = vmatprep.subr.mxu0 0.0
      %722 = vmatpush1.msra.mxu0 0.0
      %723 = vmatprep.subr.mxu0 0.0
      %724 = vmatpush1.msra.mxu0 0.0
      %725 = vmatprep.subr.mxu0 0.0
      %726 = vmatpush1.msra.mxu0 0.0
      %727 = vmatprep.subr.mxu0 0.0
      %728 = vmatpush1.msra.mxu0 0.0
      %729 = vmatprep.subr.mxu0 0.0
      %730 = vmatpush1.msra.mxu0 0.0
      %731 = vmatprep.subr.mxu0 0.0
      %732 = vmatpush1.msra.mxu0 0.0
      %733 = vmatprep.mubr.f32.mxu0 %v667
      %734 = vmatmul.mubr.f32.gmra.mrb[0].mxu0 %v437
      %v735 = vpop.f32.mrb[0].mxu0
      %v736 = vadd.f32 0.0, %v735
      %v737 = vpop.f32.mrb[0].mxu0
      %v738 = vadd.f32 0.0, %v737
      %739 = vdwg.mxu0
      %v740 = vld [vmem:[%s3] sm:$0xff]
      %v741 = vld [vmem:[%s4] sm:$0xff]
      %v742 = vadd.f32 %v736, %v738
      %743 = vadd.xlane.f32.xlu0 %v742
      %v744 = vpop.xlane.xlu0 %743
      %v745 = vmul.f32 %v744, 0.00390625
      %v746 = vsub.f32 %v736, %v745
      %v747 = vsub.f32 %v738, %v745
      %v748 = vmul.f32 %v746, %v746
      %v749 = vmul.f32 %v747, %v747
      %v750 = vadd.f32 %v748, %v749
      %751 = vadd.xlane.f32.xlu0 %v750
      %v752 = vpop.xlane.xlu0 %751
      %v753 = vmul.f32 %v752, 0.00390625
      %v754 = vadd.f32 %v753, 1e-05
      %v755 = vrsqrt.pop %v754
      %v756 = vmul.f32 %v746, %v755
      %v757 = vmul.f32 %v747, %v755
      %759 = vset.pattern.permute.xlu0 0
      %760 = vperm.xlu0 %759, %v740
      %v761 = vpop.permute.xlu0 %760
      %v763 = vmul.f32 %v756, %v761
      %v764 = vmul.f32 %v757, %v761
      %766 = vset.pattern.permute.xlu0 0
      %767 = vperm.xlu0 %766, %v741
      %v768 = vpop.permute.xlu0 %767
      %v770 = vadd.f32 %v763, %v768
      %v771 = vadd.f32 %v764, %v768
      %v772 = vsub.f32 0.0, %v770
      %v773 = vsub.f32 0.0, %v771
      %v774 = vmul.f32 %v772, 1.442695
      %v775 = vpow.pop %v774
      %v776 = vmul.f32 %v773, 1.442695
      %v777 = vpow.pop %v776
      %v778 = vadd.f32 %v775, 1.0
      %v779 = vadd.f32 %v777, 1.0
      %v780 = vrcp.pop %v778
      %v781 = vmul.f32 1.0, %v780
      %v782 = vrcp.pop %v779
      %v783 = vmul.f32 1.0, %v782
      %v784 = vmul.f32 %v770, %v781
      %v785 = vmul.f32 %v771, %v783
      %v786 = vld [vmem:[%s6] sm:$0xff]
      %v787 = vld [vmem:[%s6 + $0x8] sm:$0xff]
      %v788 = vld [vmem:[%s6 + $0x10] sm:$0xff]
      %v789 = vld [vmem:[%s6 + $0x18] sm:$0xff]
      %790 = vrot.lane.b32.xlu0 %v784, 17
      %v791 = vpop.permute.xlu0 %790
      %792 = vrot.lane.b32.xlu0 %v785, 17
      %v793 = vpop.permute.xlu0 %792
      %v794 = vsel %vm449, %v791, %v793
      %v795 = vsel %vm449, %v793, %v791
      %v796 = vmul.f32 %v795, %v458
      %v797 = vmul.f32 %v794, %v462
      %798 = vrot.lane.b32.xlu0 %v784, 16
      %v799 = vpop.permute.xlu0 %798
      %800 = vrot.lane.b32.xlu0 %v785, 16
      %v801 = vpop.permute.xlu0 %800
      %v802 = vsel %vm477, %v799, %v801
      %v803 = vsel %vm477, %v801, %v799
      %v804 = vmul.f32 %v803, %v486
      %v805 = vmul.f32 %v802, %v490
      %806 = vrot.lane.b32.xlu0 %v784, 15
      %v807 = vpop.permute.xlu0 %806
      %808 = vrot.lane.b32.xlu0 %v785, 15
      %v809 = vpop.permute.xlu0 %808
      %v810 = vsel %vm505, %v807, %v809
      %v811 = vsel %vm505, %v809, %v807
      %v812 = vmul.f32 %v811, %v514
      %v813 = vmul.f32 %v810, %v518
      %814 = vrot.lane.b32.xlu0 %v784, 1
      %v815 = vpop.permute.xlu0 %814
      %816 = vrot.lane.b32.xlu0 %v785, 1
      %v817 = vpop.permute.xlu0 %816
      %v818 = vsel %vm533, %v815, %v817
      %v819 = vsel %vm533, %v817, %v815
      %v820 = vmul.f32 %v819, %v542
      %v821 = vmul.f32 %v818, %v546
      %822 = vrot.lane.b32.xlu0 %v784, 127
      %v823 = vpop.permute.xlu0 %822
      %824 = vrot.lane.b32.xlu0 %v785, 127
      %v825 = vpop.permute.xlu0 %824
      %v826 = vsel %vm561, %v823, %v825
      %v827 = vsel %vm561, %v825, %v823
      %v828 = vmul.f32 %v826, %v570
      %v829 = vmul.f32 %v827, %v574
      %830 = vrot.lane.b32.xlu0 %v784, 113
      %v831 = vpop.permute.xlu0 %830
      %832 = vrot.lane.b32.xlu0 %v785, 113
      %v833 = vpop.permute.xlu0 %832
      %v834 = vsel %vm589, %v831, %v833
      %v835 = vsel %vm589, %v833, %v831
      %v836 = vmul.f32 %v834, %v598
      %v837 = vmul.f32 %v835, %v602
      %838 = vrot.lane.b32.xlu0 %v784, 112
      %v839 = vpop.permute.xlu0 %838
      %840 = vrot.lane.b32.xlu0 %v785, 112
      %v841 = vpop.permute.xlu0 %840
      %v842 = vsel %vm617, %v839, %v841
      %v843 = vsel %vm617, %v841, %v839
      %v844 = vmul.f32 %v842, %v626
      %v845 = vmul.f32 %v843, %v630
      %846 = vrot.lane.b32.xlu0 %v784, 111
      %v847 = vpop.permute.xlu0 %846
      %848 = vrot.lane.b32.xlu0 %v785, 111
      %v849 = vpop.permute.xlu0 %848
      %v850 = vsel %vm645, %v847, %v849
      %v851 = vsel %vm645, %v849, %v847
      %v852 = vmul.f32 %v850, %v654
      %v853 = vmul.f32 %v851, %v658
      %v854 = vld [vmem:[%s7] sm:$0xff]
      %v855 = vld [vmem:[%s7 + $0x8] sm:$0xff]
      %v856 = vld [vmem:[%s7 + $0x10] sm:$0xff]
      %v857 = vld [vmem:[%s7 + $0x18] sm:$0xff]
      %858 = vrot.lane.b32.xlu0 %v341, 17
      %v859 = vpop.permute.xlu0 %858
      %860 = vrot.lane.b32.xlu0 %v343, 17
      %v861 = vpop.permute.xlu0 %860
      %862 = vrot.lane.b32.xlu0 %v342, 17
      %v863 = vpop.permute.xlu0 %862
      %864 = vrot.lane.b32.xlu0 %v344, 17
      %v865 = vpop.permute.xlu0 %864
      %v866 = vsel %vm449, %v859, %v863
      %v867 = vsel %vm449, %v861, %v865
      %v868 = vsel %vm449, %v863, %v859
      %v869 = vsel %vm449, %v865, %v861
      %v870 = vmul.f32 %v868, %v458
      %v871 = vmul.f32 %v866, %v462
      %v872 = vmul.f32 %v869, %v458
      %v873 = vmul.f32 %v867, %v462
      %874 = vrot.lane.b32.xlu0 %v341, 16
      %v875 = vpop.permute.xlu0 %874
      %876 = vrot.lane.b32.xlu0 %v343, 16
      %v877 = vpop.permute.xlu0 %876
      %878 = vrot.lane.b32.xlu0 %v342, 16
      %v879 = vpop.permute.xlu0 %878
      %880 = vrot.lane.b32.xlu0 %v344, 16
      %v881 = vpop.permute.xlu0 %880
      %v882 = vsel %vm477, %v875, %v879
      %v883 = vsel %vm477, %v877, %v881
      %v884 = vsel %vm477, %v879, %v875
      %v885 = vsel %vm477, %v881, %v877
      %v886 = vmul.f32 %v884, %v486
      %v887 = vmul.f32 %v882, %v490
      %v888 = vmul.f32 %v885, %v486
      %v889 = vmul.f32 %v883, %v490
      %890 = vrot.lane.b32.xlu0 %v341, 15
      %v891 = vpop.permute.xlu0 %890
      %892 = vrot.lane.b32.xlu0 %v343, 15
      %v893 = vpop.permute.xlu0 %892
      %894 = vrot.lane.b32.xlu0 %v342, 15
      %v895 = vpop.permute.xlu0 %894
      %896 = vrot.lane.b32.xlu0 %v344, 15
      %v897 = vpop.permute.xlu0 %896
      %v898 = vsel %vm505, %v891, %v895
      %v899 = vsel %vm505, %v893, %v897
      %v900 = vsel %vm505, %v895, %v891
      %v901 = vsel %vm505, %v897, %v893
      %v902 = vmul.f32 %v900, %v514
      %v903 = vmul.f32 %v898, %v518
      %v904 = vmul.f32 %v901, %v514
      %v905 = vmul.f32 %v899, %v518
      %906 = vrot.lane.b32.xlu0 %v341, 1
      %v907 = vpop.permute.xlu0 %906
      %908 = vrot.lane.b32.xlu0 %v343, 1
      %v909 = vpop.permute.xlu0 %908
      %910 = vrot.lane.b32.xlu0 %v342, 1
      %v911 = vpop.permute.xlu0 %910
      %912 = vrot.lane.b32.xlu0 %v344, 1
      %v913 = vpop.permute.xlu0 %912
      %v914 = vsel %vm533, %v907, %v911
      %v915 = vsel %vm533, %v909, %v913
      %v916 = vsel %vm533, %v911, %v907
      %v917 = vsel %vm533, %v913, %v909
      %v918 = vmul.f32 %v916, %v542
      %v919 = vmul.f32 %v914, %v546
      %v920 = vmul.f32 %v917, %v542
      %v921 = vmul.f32 %v915, %v546
      %922 = vrot.lane.b32.xlu0 %v341, 127
      %v923 = vpop.permute.xlu0 %922
      %924 = vrot.lane.b32.xlu0 %v343, 127
      %v925 = vpop.permute.xlu0 %924
      %926 = vrot.lane.b32.xlu0 %v342, 127
      %v927 = vpop.permute.xlu0 %926
      %928 = vrot.lane.b32.xlu0 %v344, 127
      %v929 = vpop.permute.xlu0 %928
      %v930 = vsel %vm561, %v923, %v927
      %v931 = vsel %vm561, %v925, %v929
      %v932 = vsel %vm561, %v927, %v923
      %v933 = vsel %vm561, %v929, %v925
      %v934 = vmul.f32 %v930, %v570
      %v935 = vmul.f32 %v932, %v574
      %v936 = vmul.f32 %v931, %v570
      %v937 = vmul.f32 %v933, %v574
      %938 = vrot.lane.b32.xlu0 %v341, 113
      %v939 = vpop.permute.xlu0 %938
      %940 = vrot.lane.b32.xlu0 %v343, 113
      %v941 = vpop.permute.xlu0 %940
      %942 = vrot.lane.b32.xlu0 %v342, 113
      %v943 = vpop.permute.xlu0 %942
      %944 = vrot.lane.b32.xlu0 %v344, 113
      %v945 = vpop.permute.xlu0 %944
      %v946 = vsel %vm589, %v939, %v943
      %v947 = vsel %vm589, %v941, %v945
      %v948 = vsel %vm589, %v943, %v939
      %v949 = vsel %vm589, %v945, %v941
      %v950 = vmul.f32 %v946, %v598
      %v951 = vmul.f32 %v948, %v602
      %v952 = vmul.f32 %v947, %v598
      %v953 = vmul.f32 %v949, %v602
      %954 = vrot.lane.b32.xlu0 %v341, 112
      %v955 = vpop.permute.xlu0 %954
      %956 = vrot.lane.b32.xlu0 %v343, 112
      %v957 = vpop.permute.xlu0 %956
      %958 = vrot.lane.b32.xlu0 %v342, 112
      %v959 = vpop.permute.xlu0 %958
      %960 = vrot.lane.b32.xlu0 %v344, 112
      %v961 = vpop.permute.xlu0 %960
      %v962 = vsel %vm617, %v955, %v959
      %v963 = vsel %vm617, %v957, %v961
      %v964 = vsel %vm617, %v959, %v955
      %v965 = vsel %vm617, %v961, %v957
      %v966 = vmul.f32 %v962, %v626
      %v967 = vmul.f32 %v964, %v630
      %v968 = vmul.f32 %v963, %v626
      %v969 = vmul.f32 %v965, %v630
      %970 = vrot.lane.b32.xlu0 %v341, 111
      %v971 = vpop.permute.xlu0 %970
      %972 = vrot.lane.b32.xlu0 %v343, 111
      %v973 = vpop.permute.xlu0 %972
      %974 = vrot.lane.b32.xlu0 %v342, 111
      %v975 = vpop.permute.xlu0 %974
      %976 = vrot.lane.b32.xlu0 %v344, 111
      %v977 = vpop.permute.xlu0 %976
      %v978 = vsel %vm645, %v971, %v975
      %v979 = vsel %vm645, %v973, %v977
      %v980 = vsel %vm645, %v975, %v971
      %v981 = vsel %vm645, %v977, %v973
      %v982 = vmul.f32 %v978, %v654
      %v983 = vmul.f32 %v980, %v658
      %v984 = vmul.f32 %v979, %v654
      %v985 = vmul.f32 %v981, %v658
      %v987 = vsel %vm665, %v855, 0
      %v990 = vsel %vm665, %v857, 0
      %992 = vmatprep.subr.mxu0 %v871
      %993 = vmatpush1.msra.mxu0 %v870
      %994 = vmatprep.subr.mxu0 %v873
      %995 = vmatpush1.msra.mxu0 %v872
      %996 = vmatprep.subr.mxu0 %v887
      %997 = vmatpush1.msra.mxu0 %v886
      %998 = vmatprep.subr.mxu0 %v889
      %999 = vmatpush1.msra.mxu0 %v888
      %1000 = vmatprep.subr.mxu0 %v903
      %1001 = vmatpush1.msra.mxu0 %v902
      %1002 = vmatprep.subr.mxu0 %v905
      %1003 = vmatpush1.msra.mxu0 %v904
      %1004 = vmatprep.subr.mxu0 %v919
      %1005 = vmatpush1.msra.mxu0 %v918
      %1006 = vmatprep.subr.mxu0 %v921
      %1007 = vmatpush1.msra.mxu0 %v920
      %1008 = vmatprep.subr.mxu0 %v342
      %1009 = vmatpush1.msra.mxu0 %v341
      %1010 = vmatprep.subr.mxu0 %v344
      %1011 = vmatpush1.msra.mxu0 %v343
      %1012 = vmatprep.subr.mxu0 %v935
      %1013 = vmatpush1.msra.mxu0 %v934
      %1014 = vmatprep.subr.mxu0 %v937
      %1015 = vmatpush1.msra.mxu0 %v936
      %1016 = vmatprep.subr.mxu0 %v951
      %1017 = vmatpush1.msra.mxu0 %v950
      %1018 = vmatprep.subr.mxu0 %v953
      %1019 = vmatpush1.msra.mxu0 %v952
      %1020 = vmatprep.subr.mxu0 %v967
      %1021 = vmatpush1.msra.mxu0 %v966
      %1022 = vmatprep.subr.mxu0 %v969
      %1023 = vmatpush1.msra.mxu0 %v968
      %1024 = vmatprep.subr.mxu0 %v983
      %1025 = vmatpush1.msra.mxu0 %v982
      %1026 = vmatprep.subr.mxu0 %v985
      %1027 = vmatpush1.msra.mxu0 %v984
      %1028 = vmatprep.subr.mxu0 0.0
      %1029 = vmatpush1.msra.mxu0 0.0
      %1030 = vmatprep.subr.mxu0 0.0
      %1031 = vmatpush1.msra.mxu0 0.0
      %1032 = vmatprep.subr.mxu0 0.0
      %1033 = vmatpush1.msra.mxu0 0.0
      %1034 = vmatprep.subr.mxu0 0.0
      %1035 = vmatpush1.msra.mxu0 0.0
      %1036 = vmatprep.subr.mxu0 0.0
      %1037 = vmatpush1.msra.mxu0 0.0
      %1038 = vmatprep.subr.mxu0 0.0
      %1039 = vmatpush1.msra.mxu0 0.0
      %1040 = vmatprep.subr.mxu0 0.0
      %1041 = vmatpush1.msra.mxu0 0.0
      %1042 = vmatprep.subr.mxu0 0.0
      %1043 = vmatpush1.msra.mxu0 0.0
      %1044 = vmatprep.subr.mxu0 0.0
      %1045 = vmatpush1.msra.mxu0 0.0
      %1046 = vmatprep.subr.mxu0 0.0
      %1047 = vmatpush1.msra.mxu0 0.0
      %1048 = vmatprep.subr.mxu0 0.0
      %1049 = vmatpush1.msra.mxu0 0.0
      %1050 = vmatprep.subr.mxu0 0.0
      %1051 = vmatpush1.msra.mxu0 0.0
      %1052 = vmatprep.subr.mxu0 0.0
      %1053 = vmatpush1.msra.mxu0 0.0
      %1054 = vmatprep.subr.mxu0 0.0
      %1055 = vmatpush1.msra.mxu0 0.0
      %1056 = vmatprep.mubr.f32.mxu0 %v987
      %1057 = vmatmul.mubr.f32.gmra.mrb[0].mxu0 %v854
      %v1058 = vpop.f32.mrb[0].mxu0
      %v1059 = vadd.f32 0.0, %v1058
      %v1060 = vpop.f32.mrb[0].mxu0
      %v1061 = vadd.f32 0.0, %v1060
      %1062 = vmatprep.mubr.f32.mxu0 %v990
      %1063 = vmatmul.mubr.f32.gmra.mrb[0].mxu0 %v856
      %v1064 = vpop.f32.mrb[0].mxu0
      %v1065 = vadd.f32 0.0, %v1064
      %v1066 = vpop.f32.mrb[0].mxu0
      %v1067 = vadd.f32 0.0, %v1066
      %1068 = vdwg.mxu0
      %vm1069 = vcmask 588800
      %v1071 = vsel %vm1069, %v786, 0
      %v1074 = vsel %vm1069, %v787, 0
      %v1077 = vsel %vm1069, %v788, 0
      %v1080 = vsel %vm1069, %v789, 0
      %1082 = vmatprep.subr.mxu0 %v797
      %1083 = vmatpush1.msra.mxu0 %v796
      %1084 = vmatprep.subr.mxu0 %v805
      %1085 = vmatpush1.msra.mxu0 %v804
      %1086 = vmatprep.subr.mxu0 %v813
      %1087 = vmatpush1.msra.mxu0 %v812
      %1088 = vmatprep.subr.mxu0 %v821
      %1089 = vmatpush1.msra.mxu0 %v820
      %1090 = vmatprep.subr.mxu0 %v785
      %1091 = vmatpush1.msra.mxu0 %v784
      %1092 = vmatprep.subr.mxu0 %v829
      %1093 = vmatpush1.msra.mxu0 %v828
      %1094 = vmatprep.subr.mxu0 %v837
      %1095 = vmatpush1.msra.mxu0 %v836
      %1096 = vmatprep.subr.mxu0 %v845
      %1097 = vmatpush1.msra.mxu0 %v844
      %1098 = vmatprep.subr.mxu0 %v853
      %1099 = vmatpush1.msra.mxu0 %v852
      %1100 = vmatprep.subr.mxu0 0.0
      %1101 = vmatpush1.msra.mxu0 0.0
      %1102 = vmatprep.subr.mxu0 0.0
      %1103 = vmatpush1.msra.mxu0 0.0
      %1104 = vmatprep.subr.mxu0 0.0
      %1105 = vmatpush1.msra.mxu0 0.0
      %1106 = vmatprep.subr.mxu0 0.0
      %1107 = vmatpush1.msra.mxu0 0.0
      %1108 = vmatprep.subr.mxu0 0.0
      %1109 = vmatpush1.msra.mxu0 0.0
      %1110 = vmatprep.subr.mxu0 0.0
      %1111 = vmatpush1.msra.mxu0 0.0
      %1112 = vmatprep.subr.mxu0 0.0
      %1113 = vmatpush1.msra.mxu0 0.0
      %1114 = vmatprep.subr.mxu0 0.0
      %1115 = vmatpush1.msra.mxu0 0.0
      %1116 = vmatprep.subr.mxu0 0.0
      %1117 = vmatpush1.msra.mxu0 0.0
      %1118 = vmatprep.subr.mxu0 0.0
      %1119 = vmatpush1.msra.mxu0 0.0
      %1120 = vmatprep.subr.mxu0 0.0
      %1121 = vmatpush1.msra.mxu0 0.0
      %1122 = vmatprep.subr.mxu0 0.0
      %1123 = vmatpush1.msra.mxu0 0.0
      %1124 = vmatprep.subr.mxu0 0.0
      %1125 = vmatpush1.msra.mxu0 0.0
      %1126 = vmatprep.subr.mxu0 0.0
      %1127 = vmatpush1.msra.mxu0 0.0
      %1128 = vmatprep.subr.mxu0 0.0
      %1129 = vmatpush1.msra.mxu0 0.0
      %1130 = vmatprep.subr.mxu0 0.0
      %1131 = vmatpush1.msra.mxu0 0.0
      %1132 = vmatprep.subr.mxu0 0.0
      %1133 = vmatpush1.msra.mxu0 0.0
      %1134 = vmatprep.subr.mxu0 0.0
      %1135 = vmatpush1.msra.mxu0 0.0
      %1136 = vmatprep.subr.mxu0 0.0
      %1137 = vmatpush1.msra.mxu0 0.0
      %1138 = vmatprep.subr.mxu0 0.0
      %1139 = vmatpush1.msra.mxu0 0.0
      %1140 = vmatprep.subr.mxu0 0.0
      %1141 = vmatpush1.msra.mxu0 0.0
      %1142 = vmatprep.subr.mxu0 0.0
      %1143 = vmatpush1.msra.mxu0 0.0
      %1144 = vmatprep.subr.mxu0 0.0
      %1145 = vmatpush1.msra.mxu0 0.0
      %1146 = vmatprep.mubr.f32.mxu0 0.0
      %1147 = vmatmul.mubr.f32.gmra.mrb[0].mxu0 %v1071
      %v1148 = vpop.f32.mrb[0].mxu0
      %v1149 = vadd.f32 %v341, %v1148
      %v1150 = vpop.f32.mrb[0].mxu0
      %v1151 = vadd.f32 %v342, %v1150
      %1152 = vmatprep.mubr.f32.mxu0 0.0
      %1153 = vmatmul.mubr.f32.gmra.mrb[0].mxu0 %v1074
      %v1154 = vpop.f32.mrb[0].mxu0
      %v1155 = vadd.f32 %v343, %v1154
      %v1156 = vpop.f32.mrb[0].mxu0
      %v1157 = vadd.f32 %v344, %v1156
      %1158 = vmatprep.mubr.f32.mxu0 0.0
      %1159 = vmatmul.mubr.f32.gmra.mrb[0].mxu0 %v1077
      %v1160 = vpop.f32.mrb[0].mxu0
      %v1161 = vadd.f32 %v1059, %v1160
      %v1162 = vpop.f32.mrb[0].mxu0
      %v1163 = vadd.f32 %v1061, %v1162
      %1164 = vmatprep.mubr.f32.mxu0 0.0
      %1165 = vmatmul.mubr.f32.gmra.mrb[0].mxu0 %v1080
      %v1166 = vpop.f32.mrb[0].mxu0
      %v1167 = vadd.f32 %v1065, %v1166
      %v1168 = vpop.f32.mrb[0].mxu0
      %v1169 = vadd.f32 %v1067, %v1168
      %1170 = vdwg.mxu0
      %1171 = vst [vmem:[%s332] sm:$0xff] %v1149
      %1172 = vst [vmem:[%s332 + $0x8] sm:$0xff] %v1151
      %1173 = vst [vmem:[%s332 + $0x10] sm:$0xff] %v1155
      %1174 = vst [vmem:[%s332 + $0x18] sm:$0xff] %v1157
      %1175 = vst [vmem:[%s332 + $0x20] sm:$0xff] %v1161
      %1176 = vst [vmem:[%s332 + $0x28] sm:$0xff] %v1163
      %1177 = vst [vmem:[%s332 + $0x30] sm:$0xff] %v1167
      %1178 = vst [vmem:[%s332 + $0x38] sm:$0xff] %v1169
      %p1179 = scmp.lt.s32.totalorder %s20, 1
      %s1180 = scalar_select %p1179, %s20, 1
      %s1181 = smul.addr %s1180, 8
      %s1182 = smul.addr %s1181, 8
      %s1183 = scalar_lea.vmem %s9, %s1182
      // Predicated region
      $region57: #{residual_block_forward.1} parent=55 // pred_check
        %p1184 = pneg %p232
      $region58: #{residual_block_forward.1} parent=55 // pred_check_branch
        %1186 = sbr.rel (%p1184) target = $region60
      $region59: #{residual_block_forward.1} parent=55 // pred_region
        _
      $region60: #{residual_block_forward.1} parent=55 // pred_fallthru
        _
    $region56: #{residual_block_forward.1} parent=5 // pred_fallthru
      _
    %p1187 = scmp.le.s32.totalorder 2, %s15
    // Predicated region
    $region61: #{residual_block_forward.1} parent=5 // pred_check
      %p1188 = pneg %p1187
    $region62: #{residual_block_forward.1} parent=5 // pred_check_branch
      %1190 = sbr.rel (%p1188) target = $region64
    $region63: #{residual_block_forward.1} parent=5 // pred_region
      %s1191 = ssub.s32 %s15, 2
      // Predicated region
      $region65: #{residual_block_forward.1} parent=63 // pred_check
        %p1192 = pneg %p238
      $region66: #{residual_block_forward.1} parent=63 // pred_check_branch
        %1194 = sbr.rel (%p1192) target = $region68
      $region67: #{residual_block_forward.1} parent=63 // pred_region
        %p1195 = scmp.lt.s32.totalorder %s21, 1
        %s1196 = scalar_select %p1195, %s21, 1
        %s1197 = smul.addr %s1196, 8
        %s1198 = smul.addr %s1197, 8
        %s1199 = scalar_lea.vmem %s9, %s1198
      $region68: #{residual_block_forward.1} parent=63 // pred_fallthru
        _
    $region64: #{residual_block_forward.1} parent=5 // pred_fallthru
      _
  $region6: #{residual_block_forward.1} parent=0 // loop_footer
    %s19 = sadd.s32 1, %s15
  $region7: #{residual_block_forward.1} parent=0 // loop_footer_branch
    %14 = sbr.rel target = $region3
  $region8: #{residual_block_forward.1} parent=0 // loop_exit
    _

</llo_original>
